<compile_context>
chip_gen: v7x
topology: tpu7x:2x2x1
jax: 0.10.0
libtpu: 0.0.40
codegen_flags: <defaults>
</compile_context>

<pallas_src>
import functools

import jax
import jax.numpy as jnp
from jax.experimental import pallas as pl
from jax.experimental.pallas import tpu as pltpu

_VMEM = pl.BlockSpec(memory_space=pltpu.MemorySpace.VMEM)
_LANE = 128


def _round_up(v, m):
    return ((v + m - 1) // m) * m


# ------------------------------ fused kernel -------------------------------

def _grcn_kernel(adj_ref, x_ref, wd1_ref, wd2_ref, conf_ref, thr_ref,
                 w1_ref, b1_ref, w2_ref, b2_ref,
                 a_new_ref, a_final_ref, out_ref, *, K, beta, n_real):
    """Fused graph learner (normalize -> diag-GCN -> row-norm -> EE^T -> KNN ->
    Symmetry -> UnGSL) + fuse/normalize + 2-layer task GCN."""
    f32 = jnp.float32
    bf16 = jnp.bfloat16

    adj = adj_ref[...]                                                # [Np, Np]

    # ---- Normalize(add_loop=False): D^{-1/2} A D^{-1/2} ----
    # Input Adj is symmetric, so the column scale comes straight from an
    # axis=0 (sublane) reduction — avoids a cross-lane (N,1)->(1,N) relayout.
    deg_r = jnp.sum(adj, axis=1, keepdims=True)                       # [Np, 1]
    deg_c = jnp.sum(adj, axis=0, keepdims=True)                       # [1, Np]
    dinv_r = jnp.where(deg_r > 0, jax.lax.rsqrt(jnp.maximum(deg_r, 1e-12)), 0.0)
    dinv_c = jnp.where(deg_c > 0, jax.lax.rsqrt(jnp.maximum(deg_c, 1e-12)), 0.0)
    a_norm = adj * dinv_r * dinv_c
    a_norm_bf = a_norm.astype(bf16)

    # ---- GCNDiagEncoder(2, F): out = A_norm @ (X * diag(w)), tanh between ----
    # bf16 MXU operands, f32 accumulation.
    h = (x_ref[...] * wd1_ref[...]).astype(bf16)                      # wd is [1, Fp]
    e = jnp.tanh(jnp.dot(a_norm_bf, h, preferred_element_type=f32))
    e = jnp.dot(a_norm_bf, (e * wd2_ref[...]).astype(bf16),
                preferred_element_type=f32)

    # ---- Normalize('row-norm', p=2): rsqrt-multiply ----
    inv_nrm = jax.lax.rsqrt(jnp.maximum(jnp.sum(e * e, axis=1, keepdims=True),
                                        1e-24))
    e = e * inv_nrm

    # ---- cal_similarity_graph: E1 E1^T + E2 E2^T over halves == E E^T ----
    # Kept in f32: the result feeds a discrete top-K edge selection.
    s = jax.lax.dot_general(e, e, (((1,), (1,)), ((), ())),
                            preferred_element_type=f32)               # [Np, Np]

    # Padded node columns must never enter a row's top-K.
    col_valid = jax.lax.broadcasted_iota(jnp.int32, (1, s.shape[1]), 1) < n_real
    s = jnp.where(col_valid, s, -jnp.inf)

    # ---- KNN: keep top-K per row via K static row-max sweeps ----
    # (ties keep everything >= kth; small K => static unroll is cheapest)
    work = s
    kth = jnp.max(work, axis=1, keepdims=True)
    for _ in range(K - 1):
        work = jnp.where(work >= kth, -jnp.inf, work)
        kth = jnp.max(work, axis=1, keepdims=True)
    a_knn = jnp.where((s >= kth) & col_valid, s, 0.0)

    # ---- Symmetry(1) ----
    a_sym = a_knn + a_knn.T

    # ---- UnGSL: confidence_matrix[i, j] = confidence_vector[j] on edges ----
    cm = jnp.where(a_sym > 0, conf_ref[...], 0.0)                     # conf is [1, Np]
    weights = jax.nn.sigmoid(cm - thr_ref[...]) * 2.0                 # == /0.5
    mask = jnp.where(weights >= 1.0, weights, beta)
    a_new = a_sym * mask
    a_new_ref[...] = a_new

    # ---- Interpolate(1, 1) + Normalize ----
    a_final = a_new + adj
    a_final_ref[...] = a_final
    deg_f = jnp.sum(a_final, axis=1, keepdims=True)
    dinv_f = jnp.where(deg_f > 0, jax.lax.rsqrt(jnp.maximum(deg_f, 1e-12)), 0.0)
    # a_final is NOT symmetric (UnGSL mask is asymmetric) -> explicit relayout.
    an_f = (a_final * dinv_f * dinv_f.reshape(1, -1)).astype(bf16)

    # ---- task GCN: ReLU(A @ (X W1) + b1), A @ (H W2) + b2 ----
    h1 = jnp.dot(x_ref[...].astype(bf16), w1_ref[...].astype(bf16),
                 preferred_element_type=f32)
    h1 = jnp.dot(an_f, h1.astype(bf16), preferred_element_type=f32) + b1_ref[...]
    h1 = jnp.maximum(h1, 0.0)
    o = jnp.dot(h1.astype(bf16), w2_ref[...].astype(bf16),
                preferred_element_type=f32)
    o = jnp.dot(an_f, o.astype(bf16), preferred_element_type=f32) + b2_ref[...]
    out_ref[...] = o


# ------------------------------ GRCN forward -------------------------------

@functools.partial(jax.jit, static_argnames=("K", "beta", "num_features"))
def grcn_forward(x, adj, params, *, K, beta, num_features):
    del num_features  # half-feature inner products merged into full E E^T
    n, f = x.shape
    h_dim = params["w1"].shape[1]
    c_dim = params["w2"].shape[1]

    n_p = _round_up(n, _LANE)      # lane-pad the node dim (lane-dense NxN I/O)
    f_p = _round_up(f, _LANE)      # lane-pad feature dim
    h_p = _round_up(h_dim, _LANE)  # lane-pad hidden dim
    c_p = _round_up(c_dim, _LANE)  # lane-pad class dim

    # Zero padding propagates exactly: padded rows/cols of Adj have degree 0,
    # tanh(0)=0, padded feature/hidden/class columns stay exactly 0, and
    # padded node columns of S are masked to -inf inside the kernel.
    adj_p = jnp.pad(adj, ((0, n_p - n), (0, n_p - n)))
    x_p = jnp.pad(x, ((0, n_p - n), (0, f_p - f)))
    wd1 = jnp.pad(params["w_diag1"], (0, f_p - f)).reshape(1, -1)
    wd2 = jnp.pad(params["w_diag2"], (0, f_p - f)).reshape(1, -1)
    conf = jnp.pad(params["confidence"], (0, n_p - n)).reshape(1, -1)
    thr = jnp.pad(params["thresholds"], ((0, n_p - n), (0, 0)))
    w1p = jnp.pad(params["w1"], ((0, f_p - f), (0, h_p - h_dim)))
    b1p = jnp.pad(params["b1"], (0, h_p - h_dim)).reshape(1, -1)
    w2p = jnp.pad(params["w2"], ((0, h_p - h_dim), (0, c_p - c_dim)))
    b2p = jnp.pad(params["b2"], (0, c_p - c_dim)).reshape(1, -1)

    # VMEM budget: ~12 live NxN f32 buffers + feature/hidden slabs, 2x headroom,
    # capped below v7x's 64 MiB physical VMEM.
    est_bytes = 4 * (12 * n_p * n_p + 4 * n_p * f_p + 2 * n_p * h_p + 2 * n_p * c_p)
    vmem_limit = int(min(56 * 2**20, max(2 * est_bytes, 8 * 2**20)))

    # TODO(synk): dropout / input_dropout from GCNEncoder omitted (inference no-op).
    a_new_p, a_final_p, out_p = pl.pallas_call(
        functools.partial(_grcn_kernel, K=K, beta=beta, n_real=n),
        out_shape=(jax.ShapeDtypeStruct((n_p, n_p), jnp.float32),
                   jax.ShapeDtypeStruct((n_p, n_p), jnp.float32),
                   jax.ShapeDtypeStruct((n_p, c_p), jnp.float32)),
        in_specs=[_VMEM] * 10,
        out_specs=(_VMEM, _VMEM, _VMEM),
        compiler_params=pltpu.CompilerParams(vmem_limit_bytes=vmem_limit),
    )(adj_p, x_p, wd1, wd2, conf, thr, w1p, b1p, w2p, b2p)

    a_new = a_new_p[:n, :n]
    a_final = a_final_p[:n, :n]
    out = out_p[:n, :c_dim]
    adjs = {"new": a_new, "final": a_final}
    return out, adjs, a_new


# ---------------------------------- main ------------------------------------

if __name__ == "__main__":
    N, F, H, C, K = 64, 32, 32, 8, 4      # num_nodes, num_features, n_hidden, num_classes, gsl K
    beta = 0.1                            # conf.training['beta']
    init_value = 0.5                      # conf.training['init_value'] for thresholds

    key = jax.random.PRNGKey(0)
    kx, ka, kw1, kw2, ke = jax.random.split(key, 5)

    # node features
    x = jax.random.normal(kx, (N, F), dtype=jnp.float32)

    # random symmetric binary adjacency with self loops (dense)
    a_rand = jax.random.uniform(ka, (N, N), dtype=jnp.float32)
    adj = (a_rand < 0.1).astype(jnp.float32)
    adj = jnp.maximum(adj, adj.T)
    adj = jnp.maximum(adj, jnp.eye(N, dtype=jnp.float32))

    # TODO(synk): the original module torch.load()s a precomputed node-entropy
    # vector from disk; here it is generated deterministically in-script.
    entropy = jax.random.uniform(ke, (N,), dtype=jnp.float32)

    params = {
        # GCNDiagEncoder(2, F): per-layer diagonal weight vectors (init = ones)
        "w_diag1": jnp.ones((F,), jnp.float32),
        "w_diag2": jnp.ones((F,), jnp.float32),
        # task GCNEncoder: F -> H -> C (deterministic random init)
        "w1": jax.random.normal(kw1, (F, H), dtype=jnp.float32) * 0.1,
        "b1": jnp.zeros((H,), jnp.float32),
        "w2": jax.random.normal(kw2, (H, C), dtype=jnp.float32) * 0.1,
        "b2": jnp.zeros((C,), jnp.float32),
        # UnGSL: node-wise thresholds and confidence vector exp(-entropy)
        "thresholds": jnp.full((N, 1), init_value, jnp.float32),
        "confidence": jnp.exp(-entropy),
    }

    out, adjs, a_new = grcn_forward(x, adj, params, K=K, beta=beta, num_features=F)
    jax.block_until_ready(out)
    jax.block_until_ready(adjs["final"])
    jax.block_until_ready(a_new)

    assert out.shape == (N, C)
    assert adjs["new"].shape == (N, N) and adjs["final"].shape == (N, N)
    assert bool(jnp.all(jnp.isfinite(out)))
    assert bool(jnp.all(jnp.isfinite(adjs["final"])))
    print("KERNEL_OK")
</pallas_src>

<mosaic_0001>
module attributes {stable_mosaic.version = 11 : i64} {
  func.func @_grcn_kernel(%arg0: memref<128x128xf32, #tpu.memory_space<vmem>>, %arg1: memref<128x128xf32, #tpu.memory_space<vmem>>, %arg2: memref<1x128xf32, #tpu.memory_space<vmem>>, %arg3: memref<1x128xf32, #tpu.memory_space<vmem>>, %arg4: memref<1x128xf32, #tpu.memory_space<vmem>>, %arg5: memref<128x1xf32, #tpu.memory_space<vmem>>, %arg6: memref<128x128xf32, #tpu.memory_space<vmem>>, %arg7: memref<1x128xf32, #tpu.memory_space<vmem>>, %arg8: memref<128x128xf32, #tpu.memory_space<vmem>>, %arg9: memref<1x128xf32, #tpu.memory_space<vmem>>, %arg10: memref<128x128xf32, #tpu.memory_space<vmem>>, %arg11: memref<128x128xf32, #tpu.memory_space<vmem>>, %arg12: memref<128x128xf32, #tpu.memory_space<vmem>>) attributes {dimension_semantics = [], scalar_prefetch = 0 : i64, scratch_operands = 0 : i64, tpu.core_type = #tpu.core_type<tc>} {
    %c0 = arith.constant 0 : index
    %c0_0 = arith.constant 0 : index
    %0 = vector.load %arg0[%c0, %c0_0] : memref<128x128xf32, #tpu.memory_space<vmem>>, vector<128x128xf32>
    %cst = arith.constant dense<0.000000e+00> : vector<128xf32>
    %1 = vector.multi_reduction <add>, %0, %cst [1] : vector<128x128xf32> to vector<128xf32>
    %2 = vector.shape_cast %1 : vector<128xf32> to vector<128x1xf32>
    %cst_1 = arith.constant dense<0.000000e+00> : vector<128xf32>
    %3 = vector.multi_reduction <add>, %0, %cst_1 [0] : vector<128x128xf32> to vector<128xf32>
    %4 = vector.shape_cast %3 : vector<128xf32> to vector<1x128xf32>
    %cst_2 = arith.constant 0.000000e+00 : f32
    %5 = vector.broadcast %cst_2 : f32 to vector<128x1xf32>
    %6 = arith.cmpf ogt, %2, %5 : vector<128x1xf32>
    %cst_3 = arith.constant 9.99999996E-13 : f32
    %7 = vector.broadcast %cst_3 : f32 to vector<128x1xf32>
    %8 = arith.maximumf %2, %7 : vector<128x1xf32>
    %9 = math.rsqrt %8 : vector<128x1xf32>
    %cst_4 = arith.constant 0.000000e+00 : f32
    %10 = vector.broadcast %cst_4 : f32 to vector<128x1xf32>
    %11 = arith.select %6, %9, %10 : vector<128x1xi1>, vector<128x1xf32>
    %cst_5 = arith.constant 0.000000e+00 : f32
    %12 = vector.broadcast %cst_5 : f32 to vector<1x128xf32>
    %13 = arith.cmpf ogt, %4, %12 : vector<1x128xf32>
    %cst_6 = arith.constant 9.99999996E-13 : f32
    %14 = vector.broadcast %cst_6 : f32 to vector<1x128xf32>
    %15 = arith.maximumf %4, %14 : vector<1x128xf32>
    %16 = math.rsqrt %15 : vector<1x128xf32>
    %cst_7 = arith.constant 0.000000e+00 : f32
    %17 = vector.broadcast %cst_7 : f32 to vector<1x128xf32>
    %18 = arith.select %13, %16, %17 : vector<1x128xi1>, vector<1x128xf32>
    %19 = vector.broadcast %11 : vector<128x1xf32> to vector<128x128xf32>
    %20 = arith.mulf %0, %19 : vector<128x128xf32>
    %21 = vector.broadcast %18 : vector<1x128xf32> to vector<128x128xf32>
    %22 = arith.mulf %20, %21 : vector<128x128xf32>
    %23 = arith.truncf %22 : vector<128x128xf32> to vector<128x128xbf16>
    %c0_8 = arith.constant 0 : index
    %c0_9 = arith.constant 0 : index
    %24 = vector.load %arg1[%c0_8, %c0_9] : memref<128x128xf32, #tpu.memory_space<vmem>>, vector<128x128xf32>
    %c0_10 = arith.constant 0 : index
    %c0_11 = arith.constant 0 : index
    %25 = vector.load %arg2[%c0_10, %c0_11] : memref<1x128xf32, #tpu.memory_space<vmem>>, vector<1x128xf32>
    %26 = vector.broadcast %25 : vector<1x128xf32> to vector<128x128xf32>
    %27 = arith.mulf %24, %26 : vector<128x128xf32>
    %28 = arith.truncf %27 : vector<128x128xf32> to vector<128x128xbf16>
    %cst_12 = arith.constant dense<0.000000e+00> : vector<128x128xf32>
    %29 = tpu.matmul %23, %28, %cst_12 {dimension_numbers = #tpu.dot_dimension_numbers<[1], [0], [0], [1], [0, 0, 1, 1], [], []>} : vector<128x128xbf16>, vector<128x128xbf16>, vector<128x128xf32> -> vector<128x128xf32>
    %30 = math.tanh %29 : vector<128x128xf32>
    %c0_13 = arith.constant 0 : index
    %c0_14 = arith.constant 0 : index
    %31 = vector.load %arg3[%c0_13, %c0_14] : memref<1x128xf32, #tpu.memory_space<vmem>>, vector<1x128xf32>
    %32 = vector.broadcast %31 : vector<1x128xf32> to vector<128x128xf32>
    %33 = arith.mulf %30, %32 : vector<128x128xf32>
    %34 = arith.truncf %33 : vector<128x128xf32> to vector<128x128xbf16>
    %cst_15 = arith.constant dense<0.000000e+00> : vector<128x128xf32>
    %35 = tpu.matmul %23, %34, %cst_15 {dimension_numbers = #tpu.dot_dimension_numbers<[1], [0], [0], [1], [0, 0, 1, 1], [], []>} : vector<128x128xbf16>, vector<128x128xbf16>, vector<128x128xf32> -> vector<128x128xf32>
    %36 = arith.mulf %35, %35 : vector<128x128xf32>
    %cst_16 = arith.constant dense<0.000000e+00> : vector<128xf32>
    %37 = vector.multi_reduction <add>, %36, %cst_16 [1] : vector<128x128xf32> to vector<128xf32>
    %38 = vector.shape_cast %37 : vector<128xf32> to vector<128x1xf32>
    %cst_17 = arith.constant 1.000000e-24 : f32
    %39 = vector.broadcast %cst_17 : f32 to vector<128x1xf32>
    %40 = arith.maximumf %38, %39 : vector<128x1xf32>
    %41 = math.rsqrt %40 : vector<128x1xf32>
    %42 = vector.broadcast %41 : vector<128x1xf32> to vector<128x128xf32>
    %43 = arith.mulf %35, %42 : vector<128x128xf32>
    %cst_18 = arith.constant dense<0.000000e+00> : vector<128x128xf32>
    %44 = tpu.matmul %43, %43, %cst_18 {dimension_numbers = #tpu.dot_dimension_numbers<[1], [1], [0], [0], [0, 0, 1, 0], [], []>} : vector<128x128xf32>, vector<128x128xf32>, vector<128x128xf32> -> vector<128x128xf32>
    %45 = tpu.iota {dimensions = array<i32: 1>} : vector<1x128xi32>
    %c64_i32 = arith.constant 64 : i32
    %46 = vector.broadcast %c64_i32 : i32 to vector<1x128xi32>
    %47 = arith.cmpi slt, %45, %46 : vector<1x128xi32>
    %cst_19 = arith.constant 0xFF800000 : f32
    %48 = vector.shape_cast %47 : vector<1x128xi1> to vector<1x128xi1>
    %49 = vector.broadcast %48 : vector<1x128xi1> to vector<128x128xi1>
    %50 = vector.broadcast %cst_19 : f32 to vector<128x128xf32>
    %51 = arith.select %49, %44, %50 : vector<128x128xi1>, vector<128x128xf32>
    %cst_20 = arith.constant dense<0xFF800000> : vector<128xf32>
    %52 = vector.multi_reduction <maximumf>, %51, %cst_20 [1] : vector<128x128xf32> to vector<128xf32>
    %53 = vector.shape_cast %52 : vector<128xf32> to vector<128x1xf32>
    %54 = vector.broadcast %53 : vector<128x1xf32> to vector<128x128xf32>
    %55 = arith.cmpf oge, %51, %54 : vector<128x128xf32>
    %cst_21 = arith.constant 0xFF800000 : f32
    %56 = vector.broadcast %cst_21 : f32 to vector<128x128xf32>
    %57 = arith.select %55, %56, %51 : vector<128x128xi1>, vector<128x128xf32>
    %cst_22 = arith.constant dense<0xFF800000> : vector<128xf32>
    %58 = vector.multi_reduction <maximumf>, %57, %cst_22 [1] : vector<128x128xf32> to vector<128xf32>
    %59 = vector.shape_cast %58 : vector<128xf32> to vector<128x1xf32>
    %60 = vector.broadcast %59 : vector<128x1xf32> to vector<128x128xf32>
    %61 = arith.cmpf oge, %57, %60 : vector<128x128xf32>
    %cst_23 = arith.constant 0xFF800000 : f32
    %62 = vector.broadcast %cst_23 : f32 to vector<128x128xf32>
    %63 = arith.select %61, %62, %57 : vector<128x128xi1>, vector<128x128xf32>
    %cst_24 = arith.constant dense<0xFF800000> : vector<128xf32>
    %64 = vector.multi_reduction <maximumf>, %63, %cst_24 [1] : vector<128x128xf32> to vector<128xf32>
    %65 = vector.shape_cast %64 : vector<128xf32> to vector<128x1xf32>
    %66 = vector.broadcast %65 : vector<128x1xf32> to vector<128x128xf32>
    %67 = arith.cmpf oge, %63, %66 : vector<128x128xf32>
    %cst_25 = arith.constant 0xFF800000 : f32
    %68 = vector.broadcast %cst_25 : f32 to vector<128x128xf32>
    %69 = arith.select %67, %68, %63 : vector<128x128xi1>, vector<128x128xf32>
    %cst_26 = arith.constant dense<0xFF800000> : vector<128xf32>
    %70 = vector.multi_reduction <maximumf>, %69, %cst_26 [1] : vector<128x128xf32> to vector<128xf32>
    %71 = vector.shape_cast %70 : vector<128xf32> to vector<128x1xf32>
    %72 = vector.broadcast %71 : vector<128x1xf32> to vector<128x128xf32>
    %73 = arith.cmpf oge, %51, %72 : vector<128x128xf32>
    %74 = vector.broadcast %47 : vector<1x128xi1> to vector<128x128xi1>
    %75 = arith.andi %73, %74 : vector<128x128xi1>
    %cst_27 = arith.constant 0.000000e+00 : f32
    %76 = vector.broadcast %cst_27 : f32 to vector<128x128xf32>
    %77 = arith.select %75, %51, %76 : vector<128x128xi1>, vector<128x128xf32>
    %78 = tpu.transpose %77, [1, 0] : vector<128x128xf32> -> vector<128x128xf32>
    %79 = arith.addf %77, %78 : vector<128x128xf32>
    %cst_28 = arith.constant 0.000000e+00 : f32
    %80 = vector.broadcast %cst_28 : f32 to vector<128x128xf32>
    %81 = arith.cmpf ogt, %79, %80 : vector<128x128xf32>
    %c0_29 = arith.constant 0 : index
    %c0_30 = arith.constant 0 : index
    %82 = vector.load %arg4[%c0_29, %c0_30] : memref<1x128xf32, #tpu.memory_space<vmem>>, vector<1x128xf32>
    %cst_31 = arith.constant 0.000000e+00 : f32
    %83 = vector.shape_cast %82 : vector<1x128xf32> to vector<1x128xf32>
    %84 = vector.broadcast %83 : vector<1x128xf32> to vector<128x128xf32>
    %85 = vector.broadcast %cst_31 : f32 to vector<128x128xf32>
    %86 = arith.select %81, %84, %85 : vector<128x128xi1>, vector<128x128xf32>
    %c0_32 = arith.constant 0 : index
    %c0_33 = arith.constant 0 : index
    %87 = vector.load %arg5[%c0_32, %c0_33] : memref<128x1xf32, #tpu.memory_space<vmem>>, vector<128x1xf32>
    %88 = vector.broadcast %87 : vector<128x1xf32> to vector<128x128xf32>
    %89 = arith.subf %86, %88 : vector<128x128xf32>
    %90 = arith.negf %89 : vector<128x128xf32>
    %91 = math.exp %90 : vector<128x128xf32>
    %cst_34 = arith.constant 1.000000e+00 : f32
    %92 = vector.broadcast %cst_34 : f32 to vector<128x128xf32>
    %93 = arith.addf %92, %91 : vector<128x128xf32>
    %94 = arith.divf %92, %93 : vector<128x128xf32>
    %cst_35 = arith.constant 2.000000e+00 : f32
    %95 = vector.broadcast %cst_35 : f32 to vector<128x128xf32>
    %96 = arith.mulf %94, %95 : vector<128x128xf32>
    %cst_36 = arith.constant 1.000000e+00 : f32
    %97 = vector.broadcast %cst_36 : f32 to vector<128x128xf32>
    %98 = arith.cmpf oge, %96, %97 : vector<128x128xf32>
    %cst_37 = arith.constant 1.000000e-01 : f32
    %99 = vector.broadcast %cst_37 : f32 to vector<128x128xf32>
    %100 = arith.select %98, %96, %99 : vector<128x128xi1>, vector<128x128xf32>
    %101 = arith.mulf %79, %100 : vector<128x128xf32>
    %c0_38 = arith.constant 0 : index
    %c0_39 = arith.constant 0 : index
    %102 = vector.load %arg10[%c0_38, %c0_39] : memref<128x128xf32, #tpu.memory_space<vmem>>, vector<128x128xf32>
    tpu.vector_store %arg10[%c0_38, %c0_39], %101 {strides = array<i32>} : memref<128x128xf32, #tpu.memory_space<vmem>>, vector<128x128xf32>,
    %103 = arith.addf %101, %0 : vector<128x128xf32>
    %c0_40 = arith.constant 0 : index
    %c0_41 = arith.constant 0 : index
    %104 = vector.load %arg11[%c0_40, %c0_41] : memref<128x128xf32, #tpu.memory_space<vmem>>, vector<128x128xf32>
    tpu.vector_store %arg11[%c0_40, %c0_41], %103 {strides = array<i32>} : memref<128x128xf32, #tpu.memory_space<vmem>>, vector<128x128xf32>,
    %cst_42 = arith.constant dense<0.000000e+00> : vector<128xf32>
    %105 = vector.multi_reduction <add>, %103, %cst_42 [1] : vector<128x128xf32> to vector<128xf32>
    %106 = vector.shape_cast %105 : vector<128xf32> to vector<128x1xf32>
    %cst_43 = arith.constant 0.000000e+00 : f32
    %107 = vector.broadcast %cst_43 : f32 to vector<128x1xf32>
    %108 = arith.cmpf ogt, %106, %107 : vector<128x1xf32>
    %cst_44 = arith.constant 9.99999996E-13 : f32
    %109 = vector.broadcast %cst_44 : f32 to vector<128x1xf32>
    %110 = arith.maximumf %106, %109 : vector<128x1xf32>
    %111 = math.rsqrt %110 : vector<128x1xf32>
    %cst_45 = arith.constant 0.000000e+00 : f32
    %112 = vector.broadcast %cst_45 : f32 to vector<128x1xf32>
    %113 = arith.select %108, %111, %112 : vector<128x1xi1>, vector<128x1xf32>
    %114 = vector.broadcast %113 : vector<128x1xf32> to vector<128x128xf32>
    %115 = arith.mulf %103, %114 : vector<128x128xf32>
    %116 = vector.shape_cast %113 : vector<128x1xf32> to vector<1x128xf32>
    %117 = vector.broadcast %116 : vector<1x128xf32> to vector<128x128xf32>
    %118 = arith.mulf %115, %117 : vector<128x128xf32>
    %119 = arith.truncf %118 : vector<128x128xf32> to vector<128x128xbf16>
    %c0_46 = arith.constant 0 : index
    %c0_47 = arith.constant 0 : index
    %120 = vector.load %arg1[%c0_46, %c0_47] : memref<128x128xf32, #tpu.memory_space<vmem>>, vector<128x128xf32>
    %121 = arith.truncf %120 : vector<128x128xf32> to vector<128x128xbf16>
    %c0_48 = arith.constant 0 : index
    %c0_49 = arith.constant 0 : index
    %122 = vector.load %arg6[%c0_48, %c0_49] : memref<128x128xf32, #tpu.memory_space<vmem>>, vector<128x128xf32>
    %123 = arith.truncf %122 : vector<128x128xf32> to vector<128x128xbf16>
    %cst_50 = arith.constant dense<0.000000e+00> : vector<128x128xf32>
    %124 = tpu.matmul %121, %123, %cst_50 {dimension_numbers = #tpu.dot_dimension_numbers<[1], [0], [0], [1], [0, 0, 1, 1], [], []>} : vector<128x128xbf16>, vector<128x128xbf16>, vector<128x128xf32> -> vector<128x128xf32>
    %125 = arith.truncf %124 : vector<128x128xf32> to vector<128x128xbf16>
    %cst_51 = arith.constant dense<0.000000e+00> : vector<128x128xf32>
    %126 = tpu.matmul %119, %125, %cst_51 {dimension_numbers = #tpu.dot_dimension_numbers<[1], [0], [0], [1], [0, 0, 1, 1], [], []>} : vector<128x128xbf16>, vector<128x128xbf16>, vector<128x128xf32> -> vector<128x128xf32>
    %c0_52 = arith.constant 0 : index
    %c0_53 = arith.constant 0 : index
    %127 = vector.load %arg7[%c0_52, %c0_53] : memref<1x128xf32, #tpu.memory_space<vmem>>, vector<1x128xf32>
    %128 = vector.broadcast %127 : vector<1x128xf32> to vector<128x128xf32>
    %129 = arith.addf %126, %128 : vector<128x128xf32>
    %cst_54 = arith.constant 0.000000e+00 : f32
    %130 = vector.broadcast %cst_54 : f32 to vector<128x128xf32>
    %131 = arith.maximumf %129, %130 : vector<128x128xf32>
    %132 = arith.truncf %131 : vector<128x128xf32> to vector<128x128xbf16>
    %c0_55 = arith.constant 0 : index
    %c0_56 = arith.constant 0 : index
    %133 = vector.load %arg8[%c0_55, %c0_56] : memref<128x128xf32, #tpu.memory_space<vmem>>, vector<128x128xf32>
    %134 = arith.truncf %133 : vector<128x128xf32> to vector<128x128xbf16>
    %cst_57 = arith.constant dense<0.000000e+00> : vector<128x128xf32>
    %135 = tpu.matmul %132, %134, %cst_57 {dimension_numbers = #tpu.dot_dimension_numbers<[1], [0], [0], [1], [0, 0, 1, 1], [], []>} : vector<128x128xbf16>, vector<128x128xbf16>, vector<128x128xf32> -> vector<128x128xf32>
    %136 = arith.truncf %135 : vector<128x128xf32> to vector<128x128xbf16>
    %cst_58 = arith.constant dense<0.000000e+00> : vector<128x128xf32>
    %137 = tpu.matmul %119, %136, %cst_58 {dimension_numbers = #tpu.dot_dimension_numbers<[1], [0], [0], [1], [0, 0, 1, 1], [], []>} : vector<128x128xbf16>, vector<128x128xbf16>, vector<128x128xf32> -> vector<128x128xf32>
    %c0_59 = arith.constant 0 : index
    %c0_60 = arith.constant 0 : index
    %138 = vector.load %arg9[%c0_59, %c0_60] : memref<1x128xf32, #tpu.memory_space<vmem>>, vector<1x128xf32>
    %139 = vector.broadcast %138 : vector<1x128xf32> to vector<128x128xf32>
    %140 = arith.addf %137, %139 : vector<128x128xf32>
    %c0_61 = arith.constant 0 : index
    %c0_62 = arith.constant 0 : index
    %141 = vector.load %arg12[%c0_61, %c0_62] : memref<128x128xf32, #tpu.memory_space<vmem>>, vector<128x128xf32>
    tpu.vector_store %arg12[%c0_61, %c0_62], %140 {strides = array<i32>} : memref<128x128xf32, #tpu.memory_space<vmem>>, vector<128x128xf32>,
    return
  }
}

</mosaic_0001>

<llo_original>
// kernel: grcn_forward.1
$region0: #{grcn_forward.1}
  #allocation0 [shape = 'u32[]', space=smem, size = 0x4, offset = 0x4, fixed_abs, tag = 'smem constant byte address 0x4 - core index']
  #allocation1 [shape = 'u32[144,128]{1,0:T(1,128)}', space=vmem, size = 0x12000, scoped, tag = 'internal scratch']
  %s0 = inlined_call_operand.vmem [shape: f32[128,128], index: 0, kind: input, shape index: {}]
  %s1 = inlined_call_operand.vmem [shape: f32[128,128], index: 1, kind: input, shape index: {}]
  %s2 = inlined_call_operand.vmem [shape: f32[1,128], index: 2, kind: input, shape index: {}]
  %s3 = inlined_call_operand.vmem [shape: f32[1,128], index: 3, kind: input, shape index: {}]
  %s4 = inlined_call_operand.vmem [shape: f32[1,128], index: 4, kind: input, shape index: {}]
  %s5 = inlined_call_operand.vmem [shape: f32[128,1], index: 5, kind: input, shape index: {}]
  %s6 = inlined_call_operand.vmem [shape: f32[128,128], index: 6, kind: input, shape index: {}]
  %s7 = inlined_call_operand.vmem [shape: f32[1,128], index: 7, kind: input, shape index: {}]
  %s8 = inlined_call_operand.vmem [shape: f32[128,128], index: 8, kind: input, shape index: {}]
  %s9 = inlined_call_operand.vmem [shape: f32[1,128], index: 9, kind: input, shape index: {}]
  %s10 = inlined_call_operand.vmem [shape: f32[128,128], index: 10, kind: output, shape index: {0}]
  %s11 = inlined_call_operand.vmem [shape: f32[128,128], index: 11, kind: output, shape index: {1}]
  %s12 = inlined_call_operand.vmem [shape: f32[128,128], index: 12, kind: output, shape index: {2}]
  %13 = xla_tuple %s10, %s11, %s12
  %s14 = sld [smem:[#allocation0]]
  $region66: #{grcn_forward.1} parent=0
    _
  %s16 = ssub.s32 1, %s14
  %s17 = scalar_select 0, %s16, %s14
  // Predicated region
  $region2: #{grcn_forward.1} parent=0 // pred_check
    _
  $region3: #{grcn_forward.1} parent=0 // pred_check_branch
    %19 = sbr.rel (0) target = $region5
  $region4: #{grcn_forward.1} parent=0 // pred_region
    _
  $region5: #{grcn_forward.1} parent=0 // pred_fallthru
    _
  // Predicated region
  $region6: #{grcn_forward.1} parent=0 // pred_check
    _
  $region7: #{grcn_forward.1} parent=0 // pred_check_branch
    %21 = sbr.rel (0) target = $region9
  $region8: #{grcn_forward.1} parent=0 // pred_region
    _
  $region9: #{grcn_forward.1} parent=0 // pred_fallthru
    _
  // Predicated region
  $region10: #{grcn_forward.1} parent=0 // pred_check
    _
  $region11: #{grcn_forward.1} parent=0 // pred_check_branch
    %23 = sbr.rel (0) target = $region13
  $region12: #{grcn_forward.1} parent=0 // pred_region
    _
  $region13: #{grcn_forward.1} parent=0 // pred_fallthru
    _
  // Predicated region
  $region14: #{grcn_forward.1} parent=0 // pred_check
    _
  $region15: #{grcn_forward.1} parent=0 // pred_check_branch
    %25 = sbr.rel (0) target = $region17
  $region16: #{grcn_forward.1} parent=0 // pred_region
    _
  $region17: #{grcn_forward.1} parent=0 // pred_fallthru
    _
  // Predicated region
  $region18: #{grcn_forward.1} parent=0 // pred_check
    _
  $region19: #{grcn_forward.1} parent=0 // pred_check_branch
    %27 = sbr.rel (0) target = $region21
  $region20: #{grcn_forward.1} parent=0 // pred_region
    _
  $region21: #{grcn_forward.1} parent=0 // pred_fallthru
    _
  // Predicated region
  $region22: #{grcn_forward.1} parent=0 // pred_check
    _
  $region23: #{grcn_forward.1} parent=0 // pred_check_branch
    %29 = sbr.rel (0) target = $region25
  $region24: #{grcn_forward.1} parent=0 // pred_region
    _
  $region25: #{grcn_forward.1} parent=0 // pred_fallthru
    _
  // Predicated region
  $region26: #{grcn_forward.1} parent=0 // pred_check
    _
  $region27: #{grcn_forward.1} parent=0 // pred_check_branch
    %31 = sbr.rel (0) target = $region29
  $region28: #{grcn_forward.1} parent=0 // pred_region
    _
  $region29: #{grcn_forward.1} parent=0 // pred_fallthru
    _
  // Predicated region
  $region30: #{grcn_forward.1} parent=0 // pred_check
    _
  $region31: #{grcn_forward.1} parent=0 // pred_check_branch
    %33 = sbr.rel (0) target = $region33
  $region32: #{grcn_forward.1} parent=0 // pred_region
    _
  $region33: #{grcn_forward.1} parent=0 // pred_fallthru
    _
  // Predicated region
  $region34: #{grcn_forward.1} parent=0 // pred_check
    _
  $region35: #{grcn_forward.1} parent=0 // pred_check_branch
    %35 = sbr.rel (0) target = $region37
  $region36: #{grcn_forward.1} parent=0 // pred_region
    _
  $region37: #{grcn_forward.1} parent=0 // pred_fallthru
    _
  // Predicated region
  $region38: #{grcn_forward.1} parent=0 // pred_check
    _
  $region39: #{grcn_forward.1} parent=0 // pred_check_branch
    %37 = sbr.rel (0) target = $region41
  $region40: #{grcn_forward.1} parent=0 // pred_region
    _
  $region41: #{grcn_forward.1} parent=0 // pred_fallthru
    _
  %v39 = vld [vmem:[%s0] sm:$0xff]
  %v40 = vld [vmem:[%s0 + $0x8] sm:$0xff]
  %v41 = vld [vmem:[%s0 + $0x10] sm:$0xff]
  %v42 = vld [vmem:[%s0 + $0x18] sm:$0xff]
  %v43 = vld [vmem:[%s0 + $0x20] sm:$0xff]
  %v44 = vld [vmem:[%s0 + $0x28] sm:$0xff]
  %v45 = vld [vmem:[%s0 + $0x30] sm:$0xff]
  %v46 = vld [vmem:[%s0 + $0x38] sm:$0xff]
  %v47 = vld [vmem:[%s0 + $0x40] sm:$0xff]
  %v48 = vld [vmem:[%s0 + $0x48] sm:$0xff]
  %v49 = vld [vmem:[%s0 + $0x50] sm:$0xff]
  %v50 = vld [vmem:[%s0 + $0x58] sm:$0xff]
  %v51 = vld [vmem:[%s0 + $0x60] sm:$0xff]
  %v52 = vld [vmem:[%s0 + $0x68] sm:$0xff]
  %v53 = vld [vmem:[%s0 + $0x70] sm:$0xff]
  %v54 = vld [vmem:[%s0 + $0x78] sm:$0xff]
  %55 = vadd.xlane.f32.xlu0 %v39
  %v56 = vpop.xlane.xlu0 %55
  %57 = vadd.xlane.f32.xlu0 %v40
  %v58 = vpop.xlane.xlu0 %57
  %59 = vadd.xlane.f32.xlu0 %v41
  %v60 = vpop.xlane.xlu0 %59
  %61 = vadd.xlane.f32.xlu0 %v42
  %v62 = vpop.xlane.xlu0 %61
  %63 = vadd.xlane.f32.xlu0 %v43
  %v64 = vpop.xlane.xlu0 %63
  %65 = vadd.xlane.f32.xlu0 %v44
  %v66 = vpop.xlane.xlu0 %65
  %67 = vadd.xlane.f32.xlu0 %v45
  %v68 = vpop.xlane.xlu0 %67
  %69 = vadd.xlane.f32.xlu0 %v46
  %v70 = vpop.xlane.xlu0 %69
  %71 = vadd.xlane.f32.xlu0 %v47
  %v72 = vpop.xlane.xlu0 %71
  %73 = vadd.xlane.f32.xlu0 %v48
  %v74 = vpop.xlane.xlu0 %73
  %75 = vadd.xlane.f32.xlu0 %v49
  %v76 = vpop.xlane.xlu0 %75
  %77 = vadd.xlane.f32.xlu0 %v50
  %v78 = vpop.xlane.xlu0 %77
  %79 = vadd.xlane.f32.xlu0 %v51
  %v80 = vpop.xlane.xlu0 %79
  %81 = vadd.xlane.f32.xlu0 %v52
  %v82 = vpop.xlane.xlu0 %81
  %83 = vadd.xlane.f32.xlu0 %v53
  %v84 = vpop.xlane.xlu0 %83
  %85 = vadd.xlane.f32.xlu0 %v54
  %v86 = vpop.xlane.xlu0 %85
  %v87 = vadd.f32 %v39, %v40
  %v88 = vadd.f32 %v87, %v41
  %v89 = vadd.f32 %v88, %v42
  %v90 = vadd.f32 %v89, %v43
  %v91 = vadd.f32 %v90, %v44
  %v92 = vadd.f32 %v91, %v45
  %v93 = vadd.f32 %v92, %v46
  %v94 = vadd.f32 %v93, %v47
  %v95 = vadd.f32 %v94, %v48
  %v96 = vadd.f32 %v95, %v49
  %v97 = vadd.f32 %v96, %v50
  %v98 = vadd.f32 %v97, %v51
  %v99 = vadd.f32 %v98, %v52
  %v100 = vadd.f32 %v99, %v53
  %v101 = vadd.f32 %v100, %v54
  %v102 = vrot.slane %v101, 4
  %v103 = vadd.f32 %v101, %v102
  %v104 = vrot.slane %v103, 2
  %v105 = vadd.f32 %v103, %v104
  %v106 = vrot.slane %v105, 1
  %v107 = vadd.f32 %v105, %v106
  %vm108 = vcmp.gt.f32.partialorder %v56, 0.0
  %vm109 = vcmp.gt.f32.partialorder %v58, 0.0
  %vm110 = vcmp.gt.f32.partialorder %v60, 0.0
  %vm111 = vcmp.gt.f32.partialorder %v62, 0.0
  %vm112 = vcmp.gt.f32.partialorder %v64, 0.0
  %vm113 = vcmp.gt.f32.partialorder %v66, 0.0
  %vm114 = vcmp.gt.f32.partialorder %v68, 0.0
  %vm115 = vcmp.gt.f32.partialorder %v70, 0.0
  %vm116 = vcmp.gt.f32.partialorder %v72, 0.0
  %vm117 = vcmp.gt.f32.partialorder %v74, 0.0
  %vm118 = vcmp.gt.f32.partialorder %v76, 0.0
  %vm119 = vcmp.gt.f32.partialorder %v78, 0.0
  %vm120 = vcmp.gt.f32.partialorder %v80, 0.0
  %vm121 = vcmp.gt.f32.partialorder %v82, 0.0
  %vm122 = vcmp.gt.f32.partialorder %v84, 0.0
  %vm123 = vcmp.gt.f32.partialorder %v86, 0.0
  %v124 = vmax.f32 %v56, 1e-12
  %v125 = vmax.f32 %v58, 1e-12
  %v126 = vmax.f32 %v60, 1e-12
  %v127 = vmax.f32 %v62, 1e-12
  %v128 = vmax.f32 %v64, 1e-12
  %v129 = vmax.f32 %v66, 1e-12
  %v130 = vmax.f32 %v68, 1e-12
  %v131 = vmax.f32 %v70, 1e-12
  %v132 = vmax.f32 %v72, 1e-12
  %v133 = vmax.f32 %v74, 1e-12
  %v134 = vmax.f32 %v76, 1e-12
  %v135 = vmax.f32 %v78, 1e-12
  %v136 = vmax.f32 %v80, 1e-12
  %v137 = vmax.f32 %v82, 1e-12
  %v138 = vmax.f32 %v84, 1e-12
  %v139 = vmax.f32 %v86, 1e-12
  %v140 = vrsqrt.pop %v124
  %v141 = vrsqrt.pop %v125
  %v142 = vrsqrt.pop %v126
  %v143 = vrsqrt.pop %v127
  %v144 = vrsqrt.pop %v128
  %v145 = vrsqrt.pop %v129
  %v146 = vrsqrt.pop %v130
  %v147 = vrsqrt.pop %v131
  %v148 = vrsqrt.pop %v132
  %v149 = vrsqrt.pop %v133
  %v150 = vrsqrt.pop %v134
  %v151 = vrsqrt.pop %v135
  %v152 = vrsqrt.pop %v136
  %v153 = vrsqrt.pop %v137
  %v154 = vrsqrt.pop %v138
  %v155 = vrsqrt.pop %v139
  %v156 = vsel %vm108, %v140, 0.0
  %v157 = vsel %vm109, %v141, 0.0
  %v158 = vsel %vm110, %v142, 0.0
  %v159 = vsel %vm111, %v143, 0.0
  %v160 = vsel %vm112, %v144, 0.0
  %v161 = vsel %vm113, %v145, 0.0
  %v162 = vsel %vm114, %v146, 0.0
  %v163 = vsel %vm115, %v147, 0.0
  %v164 = vsel %vm116, %v148, 0.0
  %v165 = vsel %vm117, %v149, 0.0
  %v166 = vsel %vm118, %v150, 0.0
  %v167 = vsel %vm119, %v151, 0.0
  %v168 = vsel %vm120, %v152, 0.0
  %v169 = vsel %vm121, %v153, 0.0
  %v170 = vsel %vm122, %v154, 0.0
  %v171 = vsel %vm123, %v155, 0.0
  %vm172 = vcmp.gt.f32.partialorder %v107, 0.0
  %v173 = vmax.f32 %v107, 1e-12
  %v174 = vrsqrt.pop %v173
  %v175 = vsel %vm172, %v174, 0.0
  %v176 = vmul.f32 %v39, %v156
  %v177 = vmul.f32 %v40, %v157
  %v178 = vmul.f32 %v41, %v158
  %v179 = vmul.f32 %v42, %v159
  %v180 = vmul.f32 %v43, %v160
  %v181 = vmul.f32 %v44, %v161
  %v182 = vmul.f32 %v45, %v162
  %v183 = vmul.f32 %v46, %v163
  %v184 = vmul.f32 %v47, %v164
  %v185 = vmul.f32 %v48, %v165
  %v186 = vmul.f32 %v49, %v166
  %v187 = vmul.f32 %v50, %v167
  %v188 = vmul.f32 %v51, %v168
  %v189 = vmul.f32 %v52, %v169
  %v190 = vmul.f32 %v53, %v170
  %v191 = vmul.f32 %v54, %v171
  %v192 = vmul.f32 %v176, %v175
  %v193 = vmul.f32 %v177, %v175
  %v194 = vmul.f32 %v178, %v175
  %v195 = vmul.f32 %v179, %v175
  %v196 = vmul.f32 %v180, %v175
  %v197 = vmul.f32 %v181, %v175
  %v198 = vmul.f32 %v182, %v175
  %v199 = vmul.f32 %v183, %v175
  %v200 = vmul.f32 %v184, %v175
  %v201 = vmul.f32 %v185, %v175
  %v202 = vmul.f32 %v186, %v175
  %v203 = vmul.f32 %v187, %v175
  %v204 = vmul.f32 %v188, %v175
  %v205 = vmul.f32 %v189, %v175
  %v206 = vmul.f32 %v190, %v175
  %v207 = vmul.f32 %v191, %v175
  %v208 = vpack.c.bf16 %v193, %v192
  %v209 = vpack.c.bf16 %v195, %v194
  %v210 = vpack.c.bf16 %v197, %v196
  %v211 = vpack.c.bf16 %v199, %v198
  %v212 = vpack.c.bf16 %v201, %v200
  %v213 = vpack.c.bf16 %v203, %v202
  %v214 = vpack.c.bf16 %v205, %v204
  %v215 = vpack.c.bf16 %v207, %v206
  %v216 = vld [vmem:[%s1] sm:$0xff]
  %v217 = vld [vmem:[%s1 + $0x8] sm:$0xff]
  %v218 = vld [vmem:[%s1 + $0x10] sm:$0xff]
  %v219 = vld [vmem:[%s1 + $0x18] sm:$0xff]
  %v220 = vld [vmem:[%s1 + $0x20] sm:$0xff]
  %v221 = vld [vmem:[%s1 + $0x28] sm:$0xff]
  %v222 = vld [vmem:[%s1 + $0x30] sm:$0xff]
  %v223 = vld [vmem:[%s1 + $0x38] sm:$0xff]
  %v224 = vld [vmem:[%s1 + $0x40] sm:$0xff]
  %v225 = vld [vmem:[%s1 + $0x48] sm:$0xff]
  %v226 = vld [vmem:[%s1 + $0x50] sm:$0xff]
  %v227 = vld [vmem:[%s1 + $0x58] sm:$0xff]
  %v228 = vld [vmem:[%s1 + $0x60] sm:$0xff]
  %v229 = vld [vmem:[%s1 + $0x68] sm:$0xff]
  %v230 = vld [vmem:[%s1 + $0x70] sm:$0xff]
  %v231 = vld [vmem:[%s1 + $0x78] sm:$0xff]
  %v232 = vld [vmem:[%s2] sm:$0x1]
  %v234 = vlaneseq
  %v235 = vshrl.u32 %v234, 7
  %v236 = vsub.s32 0, %v235
  %v237 = vrot.slane %v232, %v236
  %v239 = vmul.f32 %v216, %v237
  %v240 = vmul.f32 %v217, %v237
  %v241 = vmul.f32 %v218, %v237
  %v242 = vmul.f32 %v219, %v237
  %v243 = vmul.f32 %v220, %v237
  %v244 = vmul.f32 %v221, %v237
  %v245 = vmul.f32 %v222, %v237
  %v246 = vmul.f32 %v223, %v237
  %v247 = vmul.f32 %v224, %v237
  %v248 = vmul.f32 %v225, %v237
  %v249 = vmul.f32 %v226, %v237
  %v250 = vmul.f32 %v227, %v237
  %v251 = vmul.f32 %v228, %v237
  %v252 = vmul.f32 %v229, %v237
  %v253 = vmul.f32 %v230, %v237
  %v254 = vmul.f32 %v231, %v237
  %v255 = vpack.c.bf16 %v240, %v239
  %v256 = vpack.c.bf16 %v242, %v241
  %v257 = vpack.c.bf16 %v244, %v243
  %v258 = vpack.c.bf16 %v246, %v245
  %v259 = vpack.c.bf16 %v248, %v247
  %v260 = vpack.c.bf16 %v250, %v249
  %v261 = vpack.c.bf16 %v252, %v251
  %v262 = vpack.c.bf16 %v254, %v253
  %263 = vmatprep.subr.bf16.mxu0 0
  %264 = vmatpush1.bf16.msra.mxu0 %v255
  %265 = vmatprep.subr.bf16.mxu0 0
  %266 = vmatpush1.bf16.msra.mxu0 %v256
  %267 = vmatprep.subr.bf16.mxu0 0
  %268 = vmatpush1.bf16.msra.mxu0 %v257
  %269 = vmatprep.subr.bf16.mxu0 0
  %270 = vmatpush1.bf16.msra.mxu0 %v258
  %271 = vmatprep.subr.bf16.mxu0 0
  %272 = vmatpush1.bf16.msra.mxu0 %v259
  %273 = vmatprep.subr.bf16.mxu0 0
  %274 = vmatpush1.bf16.msra.mxu0 %v260
  %275 = vmatprep.subr.bf16.mxu0 0
  %276 = vmatpush1.bf16.msra.mxu0 %v261
  %277 = vmatprep.subr.bf16.mxu0 0
  %278 = vmatpush1.bf16.msra.mxu0 %v262
  %279 = vmatprep.subr.bf16.mxu0 0
  %280 = vmatpush1.bf16.msra.mxu0 0
  %281 = vmatprep.subr.bf16.mxu0 0
  %282 = vmatpush1.bf16.msra.mxu0 0
  %283 = vmatprep.subr.bf16.mxu0 0
  %284 = vmatpush1.bf16.msra.mxu0 0
  %285 = vmatprep.subr.bf16.mxu0 0
  %286 = vmatpush1.bf16.msra.mxu0 0
  %287 = vmatprep.subr.bf16.mxu0 0
  %288 = vmatpush1.bf16.msra.mxu0 0
  %289 = vmatprep.subr.bf16.mxu0 0
  %290 = vmatpush1.bf16.msra.mxu0 0
  %291 = vmatprep.subr.bf16.mxu0 0
  %292 = vmatpush1.bf16.msra.mxu0 0
  %293 = vmatprep.subr.bf16.mxu0 0
  %294 = vmatpush1.bf16.msra.mxu0 0
  %295 = vmatprep.mubr.bf16.mxu0 0
  %296 = vmatmul.mubr.bf16.gmra.mrb[0].mxu0 %v208
  %v297 = vpop.f32.mrb[0].mxu0
  %v298 = vadd.f32 0.0, %v297
  %v299 = vpop.f32.mrb[0].mxu0
  %v300 = vpop.f32.mrb[0].mxu0
  %v301 = vadd.f32 0.0, %v300
  %v302 = vpop.f32.mrb[0].mxu0
  %303 = vmatprep.mubr.bf16.mxu0 0
  %304 = vmatmul.mubr.bf16.gmra.mrb[0].mxu0 %v209
  %v305 = vpop.f32.mrb[0].mxu0
  %v306 = vadd.f32 0.0, %v305
  %v307 = vpop.f32.mrb[0].mxu0
  %v308 = vpop.f32.mrb[0].mxu0
  %v309 = vadd.f32 0.0, %v308
  %v310 = vpop.f32.mrb[0].mxu0
  %311 = vmatprep.mubr.bf16.mxu0 0
  %312 = vmatmul.mubr.bf16.gmra.mrb[0].mxu0 %v210
  %v313 = vpop.f32.mrb[0].mxu0
  %v314 = vadd.f32 0.0, %v313
  %v315 = vpop.f32.mrb[0].mxu0
  %v316 = vpop.f32.mrb[0].mxu0
  %v317 = vadd.f32 0.0, %v316
  %v318 = vpop.f32.mrb[0].mxu0
  %319 = vmatprep.mubr.bf16.mxu0 0
  %320 = vmatmul.mubr.bf16.gmra.mrb[0].mxu0 %v211
  %v321 = vpop.f32.mrb[0].mxu0
  %v322 = vadd.f32 0.0, %v321
  %v323 = vpop.f32.mrb[0].mxu0
  %v324 = vpop.f32.mrb[0].mxu0
  %v325 = vadd.f32 0.0, %v324
  %v326 = vpop.f32.mrb[0].mxu0
  %327 = vmatprep.mubr.bf16.mxu0 0
  %328 = vmatmul.mubr.bf16.gmra.mrb[0].mxu0 %v212
  %v329 = vpop.f32.mrb[0].mxu0
  %v330 = vadd.f32 0.0, %v329
  %v331 = vpop.f32.mrb[0].mxu0
  %v332 = vpop.f32.mrb[0].mxu0
  %v333 = vadd.f32 0.0, %v332
  %v334 = vpop.f32.mrb[0].mxu0
  %335 = vmatprep.mubr.bf16.mxu0 0
  %336 = vmatmul.mubr.bf16.gmra.mrb[0].mxu0 %v213
  %v337 = vpop.f32.mrb[0].mxu0
  %v338 = vadd.f32 0.0, %v337
  %v339 = vpop.f32.mrb[0].mxu0
  %v340 = vpop.f32.mrb[0].mxu0
  %v341 = vadd.f32 0.0, %v340
  %v342 = vpop.f32.mrb[0].mxu0
  %343 = vmatprep.mubr.bf16.mxu0 0
  %344 = vmatmul.mubr.bf16.gmra.mrb[0].mxu0 %v214
  %v345 = vpop.f32.mrb[0].mxu0
  %v346 = vadd.f32 0.0, %v345
  %v347 = vpop.f32.mrb[0].mxu0
  %v348 = vpop.f32.mrb[0].mxu0
  %v349 = vadd.f32 0.0, %v348
  %v350 = vpop.f32.mrb[0].mxu0
  %351 = vmatprep.mubr.bf16.mxu0 0
  %352 = vmatmul.mubr.bf16.gmra.mrb[0].mxu0 %v215
  %v353 = vpop.f32.mrb[0].mxu0
  %v354 = vadd.f32 0.0, %v353
  %v355 = vpop.f32.mrb[0].mxu0
  %v356 = vpop.f32.mrb[0].mxu0
  %v357 = vadd.f32 0.0, %v356
  %v358 = vpop.f32.mrb[0].mxu0
  %359 = vdwg.mxu0
  %v360 = vtanh.pop %v298
  %v361 = vtanh.pop %v301
  %v362 = vtanh.pop %v306
  %v363 = vtanh.pop %v309
  %v364 = vtanh.pop %v314
  %v365 = vtanh.pop %v317
  %v366 = vtanh.pop %v322
  %v367 = vtanh.pop %v325
  %v368 = vtanh.pop %v330
  %v369 = vtanh.pop %v333
  %v370 = vtanh.pop %v338
  %v371 = vtanh.pop %v341
  %v372 = vtanh.pop %v346
  %v373 = vtanh.pop %v349
  %v374 = vtanh.pop %v354
  %v375 = vtanh.pop %v357
  %v376 = vld [vmem:[%s3] sm:$0x1]
  %v378 = vlaneseq
  %v379 = vshrl.u32 %v378, 7
  %v380 = vsub.s32 0, %v379
  %v381 = vrot.slane %v376, %v380
  %v383 = vmul.f32 %v360, %v381
  %v384 = vmul.f32 %v361, %v381
  %v385 = vmul.f32 %v362, %v381
  %v386 = vmul.f32 %v363, %v381
  %v387 = vmul.f32 %v364, %v381
  %v388 = vmul.f32 %v365, %v381
  %v389 = vmul.f32 %v366, %v381
  %v390 = vmul.f32 %v367, %v381
  %v391 = vmul.f32 %v368, %v381
  %v392 = vmul.f32 %v369, %v381
  %v393 = vmul.f32 %v370, %v381
  %v394 = vmul.f32 %v371, %v381
  %v395 = vmul.f32 %v372, %v381
  %v396 = vmul.f32 %v373, %v381
  %v397 = vmul.f32 %v374, %v381
  %v398 = vmul.f32 %v375, %v381
  %v399 = vpack.c.bf16 %v384, %v383
  %v400 = vpack.c.bf16 %v386, %v385
  %v401 = vpack.c.bf16 %v388, %v387
  %v402 = vpack.c.bf16 %v390, %v389
  %v403 = vpack.c.bf16 %v392, %v391
  %v404 = vpack.c.bf16 %v394, %v393
  %v405 = vpack.c.bf16 %v396, %v395
  %v406 = vpack.c.bf16 %v398, %v397
  %407 = vmatprep.subr.bf16.mxu0 0
  %408 = vmatpush1.bf16.msra.mxu0 %v399
  %409 = vmatprep.subr.bf16.mxu0 0
  %410 = vmatpush1.bf16.msra.mxu0 %v400
  %411 = vmatprep.subr.bf16.mxu0 0
  %412 = vmatpush1.bf16.msra.mxu0 %v401
  %413 = vmatprep.subr.bf16.mxu0 0
  %414 = vmatpush1.bf16.msra.mxu0 %v402
  %415 = vmatprep.subr.bf16.mxu0 0
  %416 = vmatpush1.bf16.msra.mxu0 %v403
  %417 = vmatprep.subr.bf16.mxu0 0
  %418 = vmatpush1.bf16.msra.mxu0 %v404
  %419 = vmatprep.subr.bf16.mxu0 0
  %420 = vmatpush1.bf16.msra.mxu0 %v405
  %421 = vmatprep.subr.bf16.mxu0 0
  %422 = vmatpush1.bf16.msra.mxu0 %v406
  %423 = vmatprep.subr.bf16.mxu0 0
  %424 = vmatpush1.bf16.msra.mxu0 0
  %425 = vmatprep.subr.bf16.mxu0 0
  %426 = vmatpush1.bf16.msra.mxu0 0
  %427 = vmatprep.subr.bf16.mxu0 0
  %428 = vmatpush1.bf16.msra.mxu0 0
  %429 = vmatprep.subr.bf16.mxu0 0
  %430 = vmatpush1.bf16.msra.mxu0 0
  %431 = vmatprep.subr.bf16.mxu0 0
  %432 = vmatpush1.bf16.msra.mxu0 0
  %433 = vmatprep.subr.bf16.mxu0 0
  %434 = vmatpush1.bf16.msra.mxu0 0
  %435 = vmatprep.subr.bf16.mxu0 0
  %436 = vmatpush1.bf16.msra.mxu0 0
  %437 = vmatprep.subr.bf16.mxu0 0
  %438 = vmatpush1.bf16.msra.mxu0 0
  %439 = vmatprep.mubr.bf16.mxu0 0
  %440 = vmatmul.mubr.bf16.gmra.mrb[0].mxu0 %v208
  %v441 = vpop.f32.mrb[0].mxu0
  %v442 = vadd.f32 0.0, %v441
  %v443 = vpop.f32.mrb[0].mxu0
  %v444 = vpop.f32.mrb[0].mxu0
  %v445 = vadd.f32 0.0, %v444
  %v446 = vpop.f32.mrb[0].mxu0
  %447 = vmatprep.mubr.bf16.mxu0 0
  %448 = vmatmul.mubr.bf16.gmra.mrb[0].mxu0 %v209
  %v449 = vpop.f32.mrb[0].mxu0
  %v450 = vadd.f32 0.0, %v449
  %v451 = vpop.f32.mrb[0].mxu0
  %v452 = vpop.f32.mrb[0].mxu0
  %v453 = vadd.f32 0.0, %v452
  %v454 = vpop.f32.mrb[0].mxu0
  %455 = vmatprep.mubr.bf16.mxu0 0
  %456 = vmatmul.mubr.bf16.gmra.mrb[0].mxu0 %v210
  %v457 = vpop.f32.mrb[0].mxu0
  %v458 = vadd.f32 0.0, %v457
  %v459 = vpop.f32.mrb[0].mxu0
  %v460 = vpop.f32.mrb[0].mxu0
  %v461 = vadd.f32 0.0, %v460
  %v462 = vpop.f32.mrb[0].mxu0
  %463 = vmatprep.mubr.bf16.mxu0 0
  %464 = vmatmul.mubr.bf16.gmra.mrb[0].mxu0 %v211
  %v465 = vpop.f32.mrb[0].mxu0
  %v466 = vadd.f32 0.0, %v465
  %v467 = vpop.f32.mrb[0].mxu0
  %v468 = vpop.f32.mrb[0].mxu0
  %v469 = vadd.f32 0.0, %v468
  %v470 = vpop.f32.mrb[0].mxu0
  %471 = vmatprep.mubr.bf16.mxu0 0
  %472 = vmatmul.mubr.bf16.gmra.mrb[0].mxu0 %v212
  %v473 = vpop.f32.mrb[0].mxu0
  %v474 = vadd.f32 0.0, %v473
  %v475 = vpop.f32.mrb[0].mxu0
  %v476 = vpop.f32.mrb[0].mxu0
  %v477 = vadd.f32 0.0, %v476
  %v478 = vpop.f32.mrb[0].mxu0
  %479 = vmatprep.mubr.bf16.mxu0 0
  %480 = vmatmul.mubr.bf16.gmra.mrb[0].mxu0 %v213
  %v481 = vpop.f32.mrb[0].mxu0
  %v482 = vadd.f32 0.0, %v481
  %v483 = vpop.f32.mrb[0].mxu0
  %v484 = vpop.f32.mrb[0].mxu0
  %v485 = vadd.f32 0.0, %v484
  %v486 = vpop.f32.mrb[0].mxu0
  %487 = vmatprep.mubr.bf16.mxu0 0
  %488 = vmatmul.mubr.bf16.gmra.mrb[0].mxu0 %v214
  %v489 = vpop.f32.mrb[0].mxu0
  %v490 = vadd.f32 0.0, %v489
  %v491 = vpop.f32.mrb[0].mxu0
  %v492 = vpop.f32.mrb[0].mxu0
  %v493 = vadd.f32 0.0, %v492
  %v494 = vpop.f32.mrb[0].mxu0
  %495 = vmatprep.mubr.bf16.mxu0 0
  %496 = vmatmul.mubr.bf16.gmra.mrb[0].mxu0 %v215
  %v497 = vpop.f32.mrb[0].mxu0
  %v498 = vadd.f32 0.0, %v497
  %v499 = vpop.f32.mrb[0].mxu0
  %v500 = vpop.f32.mrb[0].mxu0
  %v501 = vadd.f32 0.0, %v500
  %v502 = vpop.f32.mrb[0].mxu0
  %503 = vdwg.mxu0
  %v504 = vmul.f32 %v442, %v442
  %v505 = vmul.f32 %v445, %v445
  %v506 = vmul.f32 %v450, %v450
  %v507 = vmul.f32 %v453, %v453
  %v508 = vmul.f32 %v458, %v458
  %v509 = vmul.f32 %v461, %v461
  %v510 = vmul.f32 %v466, %v466
  %v511 = vmul.f32 %v469, %v469
  %v512 = vmul.f32 %v474, %v474
  %v513 = vmul.f32 %v477, %v477
  %v514 = vmul.f32 %v482, %v482
  %v515 = vmul.f32 %v485, %v485
  %v516 = vmul.f32 %v490, %v490
  %v517 = vmul.f32 %v493, %v493
  %v518 = vmul.f32 %v498, %v498
  %v519 = vmul.f32 %v501, %v501
  %520 = vadd.xlane.f32.xlu0 %v504
  %v521 = vpop.xlane.xlu0 %520
  %522 = vadd.xlane.f32.xlu0 %v505
  %v523 = vpop.xlane.xlu0 %522
  %524 = vadd.xlane.f32.xlu0 %v506
  %v525 = vpop.xlane.xlu0 %524
  %526 = vadd.xlane.f32.xlu0 %v507
  %v527 = vpop.xlane.xlu0 %526
  %528 = vadd.xlane.f32.xlu0 %v508
  %v529 = vpop.xlane.xlu0 %528
  %530 = vadd.xlane.f32.xlu0 %v509
  %v531 = vpop.xlane.xlu0 %530
  %532 = vadd.xlane.f32.xlu0 %v510
  %v533 = vpop.xlane.xlu0 %532
  %534 = vadd.xlane.f32.xlu0 %v511
  %v535 = vpop.xlane.xlu0 %534
  %536 = vadd.xlane.f32.xlu0 %v512
  %v537 = vpop.xlane.xlu0 %536
  %538 = vadd.xlane.f32.xlu0 %v513
  %v539 = vpop.xlane.xlu0 %538
  %540 = vadd.xlane.f32.xlu0 %v514
  %v541 = vpop.xlane.xlu0 %540
  %542 = vadd.xlane.f32.xlu0 %v515
  %v543 = vpop.xlane.xlu0 %542
  %544 = vadd.xlane.f32.xlu0 %v516
  %v545 = vpop.xlane.xlu0 %544
  %546 = vadd.xlane.f32.xlu0 %v517
  %v547 = vpop.xlane.xlu0 %546
  %548 = vadd.xlane.f32.xlu0 %v518
  %v549 = vpop.xlane.xlu0 %548
  %550 = vadd.xlane.f32.xlu0 %v519
  %v551 = vpop.xlane.xlu0 %550
  %v552 = vmax.f32 %v521, 1e-24
  %v553 = vmax.f32 %v523, 1e-24
  %v554 = vmax.f32 %v525, 1e-24
  %v555 = vmax.f32 %v527, 1e-24
  %v556 = vmax.f32 %v529, 1e-24
  %v557 = vmax.f32 %v531, 1e-24
  %v558 = vmax.f32 %v533, 1e-24
  %v559 = vmax.f32 %v535, 1e-24
  %v560 = vmax.f32 %v537, 1e-24
  %v561 = vmax.f32 %v539, 1e-24
  %v562 = vmax.f32 %v541, 1e-24
  %v563 = vmax.f32 %v543, 1e-24
  %v564 = vmax.f32 %v545, 1e-24
  %v565 = vmax.f32 %v547, 1e-24
  %v566 = vmax.f32 %v549, 1e-24
  %v567 = vmax.f32 %v551, 1e-24
  %v568 = vrsqrt.pop %v552
  %v569 = vrsqrt.pop %v553
  %v570 = vrsqrt.pop %v554
  %v571 = vrsqrt.pop %v555
  %v572 = vrsqrt.pop %v556
  %v573 = vrsqrt.pop %v557
  %v574 = vrsqrt.pop %v558
  %v575 = vrsqrt.pop %v559
  %v576 = vrsqrt.pop %v560
  %v577 = vrsqrt.pop %v561
  %v578 = vrsqrt.pop %v562
  %v579 = vrsqrt.pop %v563
  %v580 = vrsqrt.pop %v564
  %v581 = vrsqrt.pop %v565
  %v582 = vrsqrt.pop %v566
  %v583 = vrsqrt.pop %v567
  %v584 = vmul.f32 %v442, %v568
  %v585 = vmul.f32 %v445, %v569
  %v586 = vmul.f32 %v450, %v570
  %v587 = vmul.f32 %v453, %v571
  %v588 = vmul.f32 %v458, %v572
  %v589 = vmul.f32 %v461, %v573
  %v590 = vmul.f32 %v466, %v574
  %v591 = vmul.f32 %v469, %v575
  %v592 = vmul.f32 %v474, %v576
  %v593 = vmul.f32 %v477, %v577
  %v594 = vmul.f32 %v482, %v578
  %v595 = vmul.f32 %v485, %v579
  %v596 = vmul.f32 %v490, %v580
  %v597 = vmul.f32 %v493, %v581
  %v598 = vmul.f32 %v498, %v582
  %v599 = vmul.f32 %v501, %v583
  %600 = vmatprep.subr.mxu0 0.0
  %601 = vmatpush1.xpose.msra.mxu0 %v584
  %602 = vmatprep.subr.mxu0 0.0
  %603 = vmatpush1.xpose.msra.mxu0 %v585
  %604 = vmatprep.subr.mxu0 0.0
  %605 = vmatpush1.xpose.msra.mxu0 %v586
  %606 = vmatprep.subr.mxu0 0.0
  %607 = vmatpush1.xpose.msra.mxu0 %v587
  %608 = vmatprep.subr.mxu0 0.0
  %609 = vmatpush1.xpose.msra.mxu0 %v588
  %610 = vmatprep.subr.mxu0 0.0
  %611 = vmatpush1.xpose.msra.mxu0 %v589
  %612 = vmatprep.subr.mxu0 0.0
  %613 = vmatpush1.xpose.msra.mxu0 %v590
  %614 = vmatprep.subr.mxu0 0.0
  %615 = vmatpush1.xpose.msra.mxu0 %v591
  %616 = vmatprep.subr.mxu0 0.0
  %617 = vmatpush1.xpose.msra.mxu0 %v592
  %618 = vmatprep.subr.mxu0 0.0
  %619 = vmatpush1.xpose.msra.mxu0 %v593
  %620 = vmatprep.subr.mxu0 0.0
  %621 = vmatpush1.xpose.msra.mxu0 %v594
  %622 = vmatprep.subr.mxu0 0.0
  %623 = vmatpush1.xpose.msra.mxu0 %v595
  %624 = vmatprep.subr.mxu0 0.0
  %625 = vmatpush1.xpose.msra.mxu0 %v596
  %626 = vmatprep.subr.mxu0 0.0
  %627 = vmatpush1.xpose.msra.mxu0 %v597
  %628 = vmatprep.subr.mxu0 0.0
  %629 = vmatpush1.xpose.msra.mxu0 %v598
  %630 = vmatprep.subr.mxu0 0.0
  %631 = vmatpush1.xpose.msra.mxu0 %v599
  %632 = vmatprep.subr.mxu0 0.0
  %633 = vmatpush1.xpose.msra.mxu0 0.0
  %634 = vmatprep.subr.mxu0 0.0
  %635 = vmatpush1.xpose.msra.mxu0 0.0
  %636 = vmatprep.subr.mxu0 0.0
  %637 = vmatpush1.xpose.msra.mxu0 0.0
  %638 = vmatprep.subr.mxu0 0.0
  %639 = vmatpush1.xpose.msra.mxu0 0.0
  %640 = vmatprep.subr.mxu0 0.0
  %641 = vmatpush1.xpose.msra.mxu0 0.0
  %642 = vmatprep.subr.mxu0 0.0
  %643 = vmatpush1.xpose.msra.mxu0 0.0
  %644 = vmatprep.subr.mxu0 0.0
  %645 = vmatpush1.xpose.msra.mxu0 0.0
  %646 = vmatprep.subr.mxu0 0.0
  %647 = vmatpush1.xpose.msra.mxu0 0.0
  %648 = vmatprep.subr.mxu0 0.0
  %649 = vmatpush1.xpose.msra.mxu0 0.0
  %650 = vmatprep.subr.mxu0 0.0
  %651 = vmatpush1.xpose.msra.mxu0 0.0
  %652 = vmatprep.subr.mxu0 0.0
  %653 = vmatpush1.xpose.msra.mxu0 0.0
  %654 = vmatprep.subr.mxu0 0.0
  %655 = vmatpush1.xpose.msra.mxu0 0.0
  %656 = vmatprep.subr.mxu0 0.0
  %657 = vmatpush1.xpose.msra.mxu0 0.0
  %658 = vmatprep.subr.mxu0 0.0
  %659 = vmatpush1.xpose.msra.mxu0 0.0
  %660 = vmatprep.subr.mxu0 0.0
  %661 = vmatpush1.xpose.msra.mxu0 0.0
  %662 = vmatprep.subr.mxu0 0.0
  %663 = vmatpush1.xpose.msra.mxu0 0.0
  %664 = vmatprep.mubr.f32.mxu0 0.0
  %665 = vmatmul.mubr.f32.gmra.mrb[0].mxu0 %v584
  %v666 = vpop.f32.mrb[0].mxu0
  %v667 = vadd.f32 0.0, %v666
  %v668 = vpop.f32.mrb[0].mxu0
  %669 = vmatprep.mubr.f32.mxu0 0.0
  %670 = vmatmul.mubr.f32.gmra.mrb[0].mxu0 %v585
  %v671 = vpop.f32.mrb[0].mxu0
  %v672 = vadd.f32 0.0, %v671
  %v673 = vpop.f32.mrb[0].mxu0
  %674 = vmatprep.mubr.f32.mxu0 0.0
  %675 = vmatmul.mubr.f32.gmra.mrb[0].mxu0 %v586
  %v676 = vpop.f32.mrb[0].mxu0
  %v677 = vadd.f32 0.0, %v676
  %v678 = vpop.f32.mrb[0].mxu0
  %679 = vmatprep.mubr.f32.mxu0 0.0
  %680 = vmatmul.mubr.f32.gmra.mrb[0].mxu0 %v587
  %v681 = vpop.f32.mrb[0].mxu0
  %v682 = vadd.f32 0.0, %v681
  %v683 = vpop.f32.mrb[0].mxu0
  %684 = vmatprep.mubr.f32.mxu0 0.0
  %685 = vmatmul.mubr.f32.gmra.mrb[0].mxu0 %v588
  %v686 = vpop.f32.mrb[0].mxu0
  %v687 = vadd.f32 0.0, %v686
  %v688 = vpop.f32.mrb[0].mxu0
  %689 = vmatprep.mubr.f32.mxu0 0.0
  %690 = vmatmul.mubr.f32.gmra.mrb[0].mxu0 %v589
  %v691 = vpop.f32.mrb[0].mxu0
  %v692 = vadd.f32 0.0, %v691
  %v693 = vpop.f32.mrb[0].mxu0
  %694 = vmatprep.mubr.f32.mxu0 0.0
  %695 = vmatmul.mubr.f32.gmra.mrb[0].mxu0 %v590
  %v696 = vpop.f32.mrb[0].mxu0
  %v697 = vadd.f32 0.0, %v696
  %v698 = vpop.f32.mrb[0].mxu0
  %699 = vmatprep.mubr.f32.mxu0 0.0
  %700 = vmatmul.mubr.f32.gmra.mrb[0].mxu0 %v591
  %v701 = vpop.f32.mrb[0].mxu0
  %v702 = vadd.f32 0.0, %v701
  %v703 = vpop.f32.mrb[0].mxu0
  %704 = vmatprep.mubr.f32.mxu0 0.0
  %705 = vmatmul.mubr.f32.gmra.mrb[0].mxu0 %v592
  %v706 = vpop.f32.mrb[0].mxu0
  %v707 = vadd.f32 0.0, %v706
  %v708 = vpop.f32.mrb[0].mxu0
  %709 = vmatprep.mubr.f32.mxu0 0.0
  %710 = vmatmul.mubr.f32.gmra.mrb[0].mxu0 %v593
  %v711 = vpop.f32.mrb[0].mxu0
  %v712 = vadd.f32 0.0, %v711
  %v713 = vpop.f32.mrb[0].mxu0
  %714 = vmatprep.mubr.f32.mxu0 0.0
  %715 = vmatmul.mubr.f32.gmra.mrb[0].mxu0 %v594
  %v716 = vpop.f32.mrb[0].mxu0
  %v717 = vadd.f32 0.0, %v716
  %v718 = vpop.f32.mrb[0].mxu0
  %719 = vmatprep.mubr.f32.mxu0 0.0
  %720 = vmatmul.mubr.f32.gmra.mrb[0].mxu0 %v595
  %v721 = vpop.f32.mrb[0].mxu0
  %v722 = vadd.f32 0.0, %v721
  %v723 = vpop.f32.mrb[0].mxu0
  %724 = vmatprep.mubr.f32.mxu0 0.0
  %725 = vmatmul.mubr.f32.gmra.mrb[0].mxu0 %v596
  %v726 = vpop.f32.mrb[0].mxu0
  %v727 = vadd.f32 0.0, %v726
  %v728 = vpop.f32.mrb[0].mxu0
  %729 = vmatprep.mubr.f32.mxu0 0.0
  %730 = vmatmul.mubr.f32.gmra.mrb[0].mxu0 %v597
  %v731 = vpop.f32.mrb[0].mxu0
  %v732 = vadd.f32 0.0, %v731
  %v733 = vpop.f32.mrb[0].mxu0
  %734 = vmatprep.mubr.f32.mxu0 0.0
  %735 = vmatmul.mubr.f32.gmra.mrb[0].mxu0 %v598
  %v736 = vpop.f32.mrb[0].mxu0
  %v737 = vadd.f32 0.0, %v736
  %v738 = vpop.f32.mrb[0].mxu0
  %739 = vmatprep.mubr.f32.mxu0 0.0
  %740 = vmatmul.mubr.f32.gmra.mrb[0].mxu0 %v599
  %v741 = vpop.f32.mrb[0].mxu0
  %v742 = vadd.f32 0.0, %v741
  %v743 = vpop.f32.mrb[0].mxu0
  %744 = vdwg.mxu0
  %v745 = vlaneseq
  %v746 = vand.u32 %v745, 127
  %vm747 = vcmp.lt.s32.totalorder %v746, 64
  %v748 = vsel %vm747, 1, 0
  %vm749 = vcmp.eq.s32.totalorder %v748, 1
  %v750 = vsel %vm749, %v667, -inf
  %v751 = vsel %vm749, %v672, -inf
  %v752 = vsel %vm749, %v677, -inf
  %v753 = vsel %vm749, %v682, -inf
  %v754 = vsel %vm749, %v687, -inf
  %v755 = vsel %vm749, %v692, -inf
  %v756 = vsel %vm749, %v697, -inf
  %v757 = vsel %vm749, %v702, -inf
  %v758 = vsel %vm749, %v707, -inf
  %v759 = vsel %vm749, %v712, -inf
  %v760 = vsel %vm749, %v717, -inf
  %v761 = vsel %vm749, %v722, -inf
  %v762 = vsel %vm749, %v727, -inf
  %v763 = vsel %vm749, %v732, -inf
  %v764 = vsel %vm749, %v737, -inf
  %v765 = vsel %vm749, %v742, -inf
  %766 = vmax.xlane.f32.xlu0 %v750
  %v767 = vpop.xlane.xlu0 %766
  %768 = vmax.xlane.f32.xlu0 %v751
  %v769 = vpop.xlane.xlu0 %768
  %770 = vmax.xlane.f32.xlu0 %v752
  %v771 = vpop.xlane.xlu0 %770
  %772 = vmax.xlane.f32.xlu0 %v753
  %v773 = vpop.xlane.xlu0 %772
  %774 = vmax.xlane.f32.xlu0 %v754
  %v775 = vpop.xlane.xlu0 %774
  %776 = vmax.xlane.f32.xlu0 %v755
  %v777 = vpop.xlane.xlu0 %776
  %778 = vmax.xlane.f32.xlu0 %v756
  %v779 = vpop.xlane.xlu0 %778
  %780 = vmax.xlane.f32.xlu0 %v757
  %v781 = vpop.xlane.xlu0 %780
  %782 = vmax.xlane.f32.xlu0 %v758
  %v783 = vpop.xlane.xlu0 %782
  %784 = vmax.xlane.f32.xlu0 %v759
  %v785 = vpop.xlane.xlu0 %784
  %786 = vmax.xlane.f32.xlu0 %v760
  %v787 = vpop.xlane.xlu0 %786
  %788 = vmax.xlane.f32.xlu0 %v761
  %v789 = vpop.xlane.xlu0 %788
  %790 = vmax.xlane.f32.xlu0 %v762
  %v791 = vpop.xlane.xlu0 %790
  %792 = vmax.xlane.f32.xlu0 %v763
  %v793 = vpop.xlane.xlu0 %792
  %794 = vmax.xlane.f32.xlu0 %v764
  %v795 = vpop.xlane.xlu0 %794
  %796 = vmax.xlane.f32.xlu0 %v765
  %v797 = vpop.xlane.xlu0 %796
  %vm798 = vcmp.ge.f32.partialorder %v750, %v767
  %vm799 = vcmp.ge.f32.partialorder %v751, %v769
  %vm800 = vcmp.ge.f32.partialorder %v752, %v771
  %vm801 = vcmp.ge.f32.partialorder %v753, %v773
  %vm802 = vcmp.ge.f32.partialorder %v754, %v775
  %vm803 = vcmp.ge.f32.partialorder %v755, %v777
  %vm804 = vcmp.ge.f32.partialorder %v756, %v779
  %vm805 = vcmp.ge.f32.partialorder %v757, %v781
  %vm806 = vcmp.ge.f32.partialorder %v758, %v783
  %vm807 = vcmp.ge.f32.partialorder %v759, %v785
  %vm808 = vcmp.ge.f32.partialorder %v760, %v787
  %vm809 = vcmp.ge.f32.partialorder %v761, %v789
  %vm810 = vcmp.ge.f32.partialorder %v762, %v791
  %vm811 = vcmp.ge.f32.partialorder %v763, %v793
  %vm812 = vcmp.ge.f32.partialorder %v764, %v795
  %vm813 = vcmp.ge.f32.partialorder %v765, %v797
  %v814 = vsel %vm798, -inf, %v750
  %v815 = vsel %vm799, -inf, %v751
  %v816 = vsel %vm800, -inf, %v752
  %v817 = vsel %vm801, -inf, %v753
  %v818 = vsel %vm802, -inf, %v754
  %v819 = vsel %vm803, -inf, %v755
  %v820 = vsel %vm804, -inf, %v756
  %v821 = vsel %vm805, -inf, %v757
  %v822 = vsel %vm806, -inf, %v758
  %v823 = vsel %vm807, -inf, %v759
  %v824 = vsel %vm808, -inf, %v760
  %v825 = vsel %vm809, -inf, %v761
  %v826 = vsel %vm810, -inf, %v762
  %v827 = vsel %vm811, -inf, %v763
  %v828 = vsel %vm812, -inf, %v764
  %v829 = vsel %vm813, -inf, %v765
  %830 = vmax.xlane.f32.xlu0 %v814
  %v831 = vpop.xlane.xlu0 %830
  %832 = vmax.xlane.f32.xlu0 %v815
  %v833 = vpop.xlane.xlu0 %832
  %834 = vmax.xlane.f32.xlu0 %v816
  %v835 = vpop.xlane.xlu0 %834
  %836 = vmax.xlane.f32.xlu0 %v817
  %v837 = vpop.xlane.xlu0 %836
  %838 = vmax.xlane.f32.xlu0 %v818
  %v839 = vpop.xlane.xlu0 %838
  %840 = vmax.xlane.f32.xlu0 %v819
  %v841 = vpop.xlane.xlu0 %840
  %842 = vmax.xlane.f32.xlu0 %v820
  %v843 = vpop.xlane.xlu0 %842
  %844 = vmax.xlane.f32.xlu0 %v821
  %v845 = vpop.xlane.xlu0 %844
  %846 = vmax.xlane.f32.xlu0 %v822
  %v847 = vpop.xlane.xlu0 %846
  %848 = vmax.xlane.f32.xlu0 %v823
  %v849 = vpop.xlane.xlu0 %848
  %850 = vmax.xlane.f32.xlu0 %v824
  %v851 = vpop.xlane.xlu0 %850
  %852 = vmax.xlane.f32.xlu0 %v825
  %v853 = vpop.xlane.xlu0 %852
  %854 = vmax.xlane.f32.xlu0 %v826
  %v855 = vpop.xlane.xlu0 %854
  %856 = vmax.xlane.f32.xlu0 %v827
  %v857 = vpop.xlane.xlu0 %856
  %858 = vmax.xlane.f32.xlu0 %v828
  %v859 = vpop.xlane.xlu0 %858
  %860 = vmax.xlane.f32.xlu0 %v829
  %v861 = vpop.xlane.xlu0 %860
  %vm862 = vcmp.ge.f32.partialorder %v814, %v831
  %vm863 = vcmp.ge.f32.partialorder %v815, %v833
  %vm864 = vcmp.ge.f32.partialorder %v816, %v835
  %vm865 = vcmp.ge.f32.partialorder %v817, %v837
  %vm866 = vcmp.ge.f32.partialorder %v818, %v839
  %vm867 = vcmp.ge.f32.partialorder %v819, %v841
  %vm868 = vcmp.ge.f32.partialorder %v820, %v843
  %vm869 = vcmp.ge.f32.partialorder %v821, %v845
  %vm870 = vcmp.ge.f32.partialorder %v822, %v847
  %vm871 = vcmp.ge.f32.partialorder %v823, %v849
  %vm872 = vcmp.ge.f32.partialorder %v824, %v851
  %vm873 = vcmp.ge.f32.partialorder %v825, %v853
  %vm874 = vcmp.ge.f32.partialorder %v826, %v855
  %vm875 = vcmp.ge.f32.partialorder %v827, %v857
  %vm876 = vcmp.ge.f32.partialorder %v828, %v859
  %vm877 = vcmp.ge.f32.partialorder %v829, %v861
  %v878 = vsel %vm862, -inf, %v814
  %v879 = vsel %vm863, -inf, %v815
  %v880 = vsel %vm864, -inf, %v816
  %v881 = vsel %vm865, -inf, %v817
  %v882 = vsel %vm866, -inf, %v818
  %v883 = vsel %vm867, -inf, %v819
  %v884 = vsel %vm868, -inf, %v820
  %v885 = vsel %vm869, -inf, %v821
  %v886 = vsel %vm870, -inf, %v822
  %v887 = vsel %vm871, -inf, %v823
  %v888 = vsel %vm872, -inf, %v824
  %v889 = vsel %vm873, -inf, %v825
  %v890 = vsel %vm874, -inf, %v826
  %v891 = vsel %vm875, -inf, %v827
  %v892 = vsel %vm876, -inf, %v828
  %v893 = vsel %vm877, -inf, %v829
  %894 = vmax.xlane.f32.xlu0 %v878
  %v895 = vpop.xlane.xlu0 %894
  %896 = vmax.xlane.f32.xlu0 %v879
  %v897 = vpop.xlane.xlu0 %896
  %898 = vmax.xlane.f32.xlu0 %v880
  %v899 = vpop.xlane.xlu0 %898
  %900 = vmax.xlane.f32.xlu0 %v881
  %v901 = vpop.xlane.xlu0 %900
  %902 = vmax.xlane.f32.xlu0 %v882
  %v903 = vpop.xlane.xlu0 %902
  %904 = vmax.xlane.f32.xlu0 %v883
  %v905 = vpop.xlane.xlu0 %904
  %906 = vmax.xlane.f32.xlu0 %v884
  %v907 = vpop.xlane.xlu0 %906
  %908 = vmax.xlane.f32.xlu0 %v885
  %v909 = vpop.xlane.xlu0 %908
  %910 = vmax.xlane.f32.xlu0 %v886
  %v911 = vpop.xlane.xlu0 %910
  %912 = vmax.xlane.f32.xlu0 %v887
  %v913 = vpop.xlane.xlu0 %912
  %914 = vmax.xlane.f32.xlu0 %v888
  %v915 = vpop.xlane.xlu0 %914
  %916 = vmax.xlane.f32.xlu0 %v889
  %v917 = vpop.xlane.xlu0 %916
  %918 = vmax.xlane.f32.xlu0 %v890
  %v919 = vpop.xlane.xlu0 %918
  %920 = vmax.xlane.f32.xlu0 %v891
  %v921 = vpop.xlane.xlu0 %920
  %922 = vmax.xlane.f32.xlu0 %v892
  %v923 = vpop.xlane.xlu0 %922
  %924 = vmax.xlane.f32.xlu0 %v893
  %v925 = vpop.xlane.xlu0 %924
  %vm926 = vcmp.ge.f32.partialorder %v878, %v895
  %vm927 = vcmp.ge.f32.partialorder %v879, %v897
  %vm928 = vcmp.ge.f32.partialorder %v880, %v899
  %vm929 = vcmp.ge.f32.partialorder %v881, %v901
  %vm930 = vcmp.ge.f32.partialorder %v882, %v903
  %vm931 = vcmp.ge.f32.partialorder %v883, %v905
  %vm932 = vcmp.ge.f32.partialorder %v884, %v907
  %vm933 = vcmp.ge.f32.partialorder %v885, %v909
  %vm934 = vcmp.ge.f32.partialorder %v886, %v911
  %vm935 = vcmp.ge.f32.partialorder %v887, %v913
  %vm936 = vcmp.ge.f32.partialorder %v888, %v915
  %vm937 = vcmp.ge.f32.partialorder %v889, %v917
  %vm938 = vcmp.ge.f32.partialorder %v890, %v919
  %vm939 = vcmp.ge.f32.partialorder %v891, %v921
  %vm940 = vcmp.ge.f32.partialorder %v892, %v923
  %vm941 = vcmp.ge.f32.partialorder %v893, %v925
  %v942 = vsel %vm926, -inf, %v878
  %v943 = vsel %vm927, -inf, %v879
  %v944 = vsel %vm928, -inf, %v880
  %v945 = vsel %vm929, -inf, %v881
  %v946 = vsel %vm930, -inf, %v882
  %v947 = vsel %vm931, -inf, %v883
  %v948 = vsel %vm932, -inf, %v884
  %v949 = vsel %vm933, -inf, %v885
  %v950 = vsel %vm934, -inf, %v886
  %v951 = vsel %vm935, -inf, %v887
  %v952 = vsel %vm936, -inf, %v888
  %v953 = vsel %vm937, -inf, %v889
  %v954 = vsel %vm938, -inf, %v890
  %v955 = vsel %vm939, -inf, %v891
  %v956 = vsel %vm940, -inf, %v892
  %v957 = vsel %vm941, -inf, %v893
  %958 = vmax.xlane.f32.xlu0 %v942
  %v959 = vpop.xlane.xlu0 %958
  %960 = vmax.xlane.f32.xlu0 %v943
  %v961 = vpop.xlane.xlu0 %960
  %962 = vmax.xlane.f32.xlu0 %v944
  %v963 = vpop.xlane.xlu0 %962
  %964 = vmax.xlane.f32.xlu0 %v945
  %v965 = vpop.xlane.xlu0 %964
  %966 = vmax.xlane.f32.xlu0 %v946
  %v967 = vpop.xlane.xlu0 %966
  %968 = vmax.xlane.f32.xlu0 %v947
  %v969 = vpop.xlane.xlu0 %968
  %970 = vmax.xlane.f32.xlu0 %v948
  %v971 = vpop.xlane.xlu0 %970
  %972 = vmax.xlane.f32.xlu0 %v949
  %v973 = vpop.xlane.xlu0 %972
  %974 = vmax.xlane.f32.xlu0 %v950
  %v975 = vpop.xlane.xlu0 %974
  %976 = vmax.xlane.f32.xlu0 %v951
  %v977 = vpop.xlane.xlu0 %976
  %978 = vmax.xlane.f32.xlu0 %v952
  %v979 = vpop.xlane.xlu0 %978
  %980 = vmax.xlane.f32.xlu0 %v953
  %v981 = vpop.xlane.xlu0 %980
  %982 = vmax.xlane.f32.xlu0 %v954
  %v983 = vpop.xlane.xlu0 %982
  %984 = vmax.xlane.f32.xlu0 %v955
  %v985 = vpop.xlane.xlu0 %984
  %986 = vmax.xlane.f32.xlu0 %v956
  %v987 = vpop.xlane.xlu0 %986
  %988 = vmax.xlane.f32.xlu0 %v957
  %v989 = vpop.xlane.xlu0 %988
  %vm990 = vcmp.ge.f32.partialorder %v750, %v959
  %vm991 = vcmp.ge.f32.partialorder %v751, %v961
  %vm992 = vcmp.ge.f32.partialorder %v752, %v963
  %vm993 = vcmp.ge.f32.partialorder %v753, %v965
  %vm994 = vcmp.ge.f32.partialorder %v754, %v967
  %vm995 = vcmp.ge.f32.partialorder %v755, %v969
  %vm996 = vcmp.ge.f32.partialorder %v756, %v971
  %vm997 = vcmp.ge.f32.partialorder %v757, %v973
  %vm998 = vcmp.ge.f32.partialorder %v758, %v975
  %vm999 = vcmp.ge.f32.partialorder %v759, %v977
  %vm1000 = vcmp.ge.f32.partialorder %v760, %v979
  %vm1001 = vcmp.ge.f32.partialorder %v761, %v981
  %vm1002 = vcmp.ge.f32.partialorder %v762, %v983
  %vm1003 = vcmp.ge.f32.partialorder %v763, %v985
  %vm1004 = vcmp.ge.f32.partialorder %v764, %v987
  %vm1005 = vcmp.ge.f32.partialorder %v765, %v989
  %vm1006 = vmand %vm990, %vm749
  %vm1007 = vmand %vm991, %vm749
  %vm1008 = vmand %vm992, %vm749
  %vm1009 = vmand %vm993, %vm749
  %vm1010 = vmand %vm994, %vm749
  %vm1011 = vmand %vm995, %vm749
  %vm1012 = vmand %vm996, %vm749
  %vm1013 = vmand %vm997, %vm749
  %vm1014 = vmand %vm998, %vm749
  %vm1015 = vmand %vm999, %vm749
  %vm1016 = vmand %vm1000, %vm749
  %vm1017 = vmand %vm1001, %vm749
  %vm1018 = vmand %vm1002, %vm749
  %vm1019 = vmand %vm1003, %vm749
  %vm1020 = vmand %vm1004, %vm749
  %vm1021 = vmand %vm1005, %vm749
  %v1022 = vsel %vm1006, %v750, 0.0
  %v1023 = vsel %vm1007, %v751, 0.0
  %v1024 = vsel %vm1008, %v752, 0.0
  %v1025 = vsel %vm1009, %v753, 0.0
  %v1026 = vsel %vm1010, %v754, 0.0
  %v1027 = vsel %vm1011, %v755, 0.0
  %v1028 = vsel %vm1012, %v756, 0.0
  %v1029 = vsel %vm1013, %v757, 0.0
  %v1030 = vsel %vm1014, %v758, 0.0
  %v1031 = vsel %vm1015, %v759, 0.0
  %v1032 = vsel %vm1016, %v760, 0.0
  %v1033 = vsel %vm1017, %v761, 0.0
  %v1034 = vsel %vm1018, %v762, 0.0
  %v1035 = vsel %vm1019, %v763, 0.0
  %v1036 = vsel %vm1020, %v764, 0.0
  %v1037 = vsel %vm1021, %v765, 0.0
  %1038 = vxpose.xlu0.b32.start [1/16] %v1022, 128
  %1039 = vxpose.xlu0.b32.cont [2/16] %v1023, 128
  %1040 = vxpose.xlu0.b32.cont [3/16] %v1024, 128
  %1041 = vxpose.xlu0.b32.cont [4/16] %v1025, 128
  %1042 = vxpose.xlu0.b32.cont [5/16] %v1026, 128
  %1043 = vxpose.xlu0.b32.cont [6/16] %v1027, 128
  %1044 = vxpose.xlu0.b32.cont [7/16] %v1028, 128
  %1045 = vxpose.xlu0.b32.cont [8/16] %v1029, 128
  %1046 = vxpose.xlu0.b32.cont [9/16] %v1030, 128
  %1047 = vxpose.xlu0.b32.cont [10/16] %v1031, 128
  %1048 = vxpose.xlu0.b32.cont [11/16] %v1032, 128
  %1049 = vxpose.xlu0.b32.cont [12/16] %v1033, 128
  %1050 = vxpose.xlu0.b32.cont [13/16] %v1034, 128
  %1051 = vxpose.xlu0.b32.cont [14/16] %v1035, 128
  %1052 = vxpose.xlu0.b32.cont [15/16] %v1036, 128
  %1053 = vxpose.xlu0.b32.end [16/16] %v1037, 128
  %v1054 = vpop.trf.xlu0
  %v1055 = vpop.trf.xlu0
  %v1056 = vpop.trf.xlu0
  %v1057 = vpop.trf.xlu0
  %v1058 = vpop.trf.xlu0
  %v1059 = vpop.trf.xlu0
  %v1060 = vpop.trf.xlu0
  %v1061 = vpop.trf.xlu0
  %v1062 = vpop.trf.xlu0
  %v1063 = vpop.trf.xlu0
  %v1064 = vpop.trf.xlu0
  %v1065 = vpop.trf.xlu0
  %v1066 = vpop.trf.xlu0
  %v1067 = vpop.trf.xlu0
  %v1068 = vpop.trf.xlu0
  %v1069 = vpop.trf.xlu0
  %v1070 = vadd.f32 %v1022, %v1054
  %v1071 = vadd.f32 %v1023, %v1055
  %v1072 = vadd.f32 %v1024, %v1056
  %v1073 = vadd.f32 %v1025, %v1057
  %v1074 = vadd.f32 %v1026, %v1058
  %v1075 = vadd.f32 %v1027, %v1059
  %v1076 = vadd.f32 %v1028, %v1060
  %v1077 = vadd.f32 %v1029, %v1061
  %v1078 = vadd.f32 %v1030, %v1062
  %v1079 = vadd.f32 %v1031, %v1063
  %v1080 = vadd.f32 %v1032, %v1064
  %v1081 = vadd.f32 %v1033, %v1065
  %v1082 = vadd.f32 %v1034, %v1066
  %v1083 = vadd.f32 %v1035, %v1067
  %v1084 = vadd.f32 %v1036, %v1068
  %v1085 = vadd.f32 %v1037, %v1069
  %vm1086 = vcmp.gt.f32.partialorder %v1070, 0.0
  %vm1087 = vcmp.gt.f32.partialorder %v1071, 0.0
  %vm1088 = vcmp.gt.f32.partialorder %v1072, 0.0
  %vm1089 = vcmp.gt.f32.partialorder %v1073, 0.0
  %vm1090 = vcmp.gt.f32.partialorder %v1074, 0.0
  %vm1091 = vcmp.gt.f32.partialorder %v1075, 0.0
  %vm1092 = vcmp.gt.f32.partialorder %v1076, 0.0
  %vm1093 = vcmp.gt.f32.partialorder %v1077, 0.0
  %vm1094 = vcmp.gt.f32.partialorder %v1078, 0.0
  %vm1095 = vcmp.gt.f32.partialorder %v1079, 0.0
  %vm1096 = vcmp.gt.f32.partialorder %v1080, 0.0
  %vm1097 = vcmp.gt.f32.partialorder %v1081, 0.0
  %vm1098 = vcmp.gt.f32.partialorder %v1082, 0.0
  %vm1099 = vcmp.gt.f32.partialorder %v1083, 0.0
  %vm1100 = vcmp.gt.f32.partialorder %v1084, 0.0
  %vm1101 = vcmp.gt.f32.partialorder %v1085, 0.0
  %v1102 = vld [vmem:[%s4] sm:$0x1]
  %v1104 = vlaneseq
  %v1105 = vshrl.u32 %v1104, 7
  %v1106 = vsub.s32 0, %v1105
  %v1107 = vrot.slane %v1102, %v1106
  %v1109 = vsel %vm1086, %v1107, 0.0
  %v1110 = vsel %vm1087, %v1107, 0.0
  %v1111 = vsel %vm1088, %v1107, 0.0
  %v1112 = vsel %vm1089, %v1107, 0.0
  %v1113 = vsel %vm1090, %v1107, 0.0
  %v1114 = vsel %vm1091, %v1107, 0.0
  %v1115 = vsel %vm1092, %v1107, 0.0
  %v1116 = vsel %vm1093, %v1107, 0.0
  %v1117 = vsel %vm1094, %v1107, 0.0
  %v1118 = vsel %vm1095, %v1107, 0.0
  %v1119 = vsel %vm1096, %v1107, 0.0
  %v1120 = vsel %vm1097, %v1107, 0.0
  %v1121 = vsel %vm1098, %v1107, 0.0
  %v1122 = vsel %vm1099, %v1107, 0.0
  %v1123 = vsel %vm1100, %v1107, 0.0
  %v1124 = vsel %vm1101, %v1107, 0.0
  %v1125 = vld [vmem:[%s5] sm:$0xff]
  %v1126 = vld [vmem:[%s5 + $0x8] sm:$0xff]
  %v1127 = vld [vmem:[%s5 + $0x10] sm:$0xff]
  %v1128 = vld [vmem:[%s5 + $0x18] sm:$0xff]
  %v1129 = vld [vmem:[%s5 + $0x20] sm:$0xff]
  %v1130 = vld [vmem:[%s5 + $0x28] sm:$0xff]
  %v1131 = vld [vmem:[%s5 + $0x30] sm:$0xff]
  %v1132 = vld [vmem:[%s5 + $0x38] sm:$0xff]
  %v1133 = vld [vmem:[%s5 + $0x40] sm:$0xff]
  %v1134 = vld [vmem:[%s5 + $0x48] sm:$0xff]
  %v1135 = vld [vmem:[%s5 + $0x50] sm:$0xff]
  %v1136 = vld [vmem:[%s5 + $0x58] sm:$0xff]
  %v1137 = vld [vmem:[%s5 + $0x60] sm:$0xff]
  %v1138 = vld [vmem:[%s5 + $0x68] sm:$0xff]
  %v1139 = vld [vmem:[%s5 + $0x70] sm:$0xff]
  %v1140 = vld [vmem:[%s5 + $0x78] sm:$0xff]
  %1142 = vset.pattern.permute.xlu0 0
  %1143 = vperm.xlu0 %1142, %v1125
  %v1144 = vpop.permute.xlu0 %1143
  %1147 = vset.pattern.permute.xlu0 0
  %1148 = vperm.xlu0 %1147, %v1126
  %v1149 = vpop.permute.xlu0 %1148
  %1152 = vset.pattern.permute.xlu0 0
  %1153 = vperm.xlu0 %1152, %v1127
  %v1154 = vpop.permute.xlu0 %1153
  %1157 = vset.pattern.permute.xlu0 0
  %1158 = vperm.xlu0 %1157, %v1128
  %v1159 = vpop.permute.xlu0 %1158
  %1162 = vset.pattern.permute.xlu0 0
  %1163 = vperm.xlu0 %1162, %v1129
  %v1164 = vpop.permute.xlu0 %1163
  %1167 = vset.pattern.permute.xlu0 0
  %1168 = vperm.xlu0 %1167, %v1130
  %v1169 = vpop.permute.xlu0 %1168
  %1172 = vset.pattern.permute.xlu0 0
  %1173 = vperm.xlu0 %1172, %v1131
  %v1174 = vpop.permute.xlu0 %1173
  %1177 = vset.pattern.permute.xlu0 0
  %1178 = vperm.xlu0 %1177, %v1132
  %v1179 = vpop.permute.xlu0 %1178
  %1182 = vset.pattern.permute.xlu0 0
  %1183 = vperm.xlu0 %1182, %v1133
  %v1184 = vpop.permute.xlu0 %1183
  %1187 = vset.pattern.permute.xlu0 0
  %1188 = vperm.xlu0 %1187, %v1134
  %v1189 = vpop.permute.xlu0 %1188
  %1192 = vset.pattern.permute.xlu0 0
  %1193 = vperm.xlu0 %1192, %v1135
  %v1194 = vpop.permute.xlu0 %1193
  %1197 = vset.pattern.permute.xlu0 0
  %1198 = vperm.xlu0 %1197, %v1136
  %v1199 = vpop.permute.xlu0 %1198
  %1202 = vset.pattern.permute.xlu0 0
  %1203 = vperm.xlu0 %1202, %v1137
  %v1204 = vpop.permute.xlu0 %1203
  %1207 = vset.pattern.permute.xlu0 0
  %1208 = vperm.xlu0 %1207, %v1138
  %v1209 = vpop.permute.xlu0 %1208
  %1212 = vset.pattern.permute.xlu0 0
  %1213 = vperm.xlu0 %1212, %v1139
  %v1214 = vpop.permute.xlu0 %1213
  %1217 = vset.pattern.permute.xlu0 0
  %1218 = vperm.xlu0 %1217, %v1140
  %v1219 = vpop.permute.xlu0 %1218
  %v1221 = vsub.f32 %v1109, %v1144
  %v1222 = vsub.f32 %v1110, %v1149
  %v1223 = vsub.f32 %v1111, %v1154
  %v1224 = vsub.f32 %v1112, %v1159
  %v1225 = vsub.f32 %v1113, %v1164
  %v1226 = vsub.f32 %v1114, %v1169
  %v1227 = vsub.f32 %v1115, %v1174
  %v1228 = vsub.f32 %v1116, %v1179
  %v1229 = vsub.f32 %v1117, %v1184
  %v1230 = vsub.f32 %v1118, %v1189
  %v1231 = vsub.f32 %v1119, %v1194
  %v1232 = vsub.f32 %v1120, %v1199
  %v1233 = vsub.f32 %v1121, %v1204
  %v1234 = vsub.f32 %v1122, %v1209
  %v1235 = vsub.f32 %v1123, %v1214
  %v1236 = vsub.f32 %v1124, %v1219
  %v1237 = vxor.u32 %v1221, 2147483648
  %v1238 = vxor.u32 %v1222, 2147483648
  %v1239 = vxor.u32 %v1223, 2147483648
  %v1240 = vxor.u32 %v1224, 2147483648
  %v1241 = vxor.u32 %v1225, 2147483648
  %v1242 = vxor.u32 %v1226, 2147483648
  %v1243 = vxor.u32 %v1227, 2147483648
  %v1244 = vxor.u32 %v1228, 2147483648
  %v1245 = vxor.u32 %v1229, 2147483648
  %v1246 = vxor.u32 %v1230, 2147483648
  %v1247 = vxor.u32 %v1231, 2147483648
  %v1248 = vxor.u32 %v1232, 2147483648
  %v1249 = vxor.u32 %v1233, 2147483648
  %v1250 = vxor.u32 %v1234, 2147483648
  %v1251 = vxor.u32 %v1235, 2147483648
  %v1252 = vxor.u32 %v1236, 2147483648
  %v1253 = vmul.f32 %v1237, 1.442695
  %v1254 = vpow.pop %v1253
  %v1255 = vmul.f32 %v1238, 1.442695
  %v1256 = vpow.pop %v1255
  %v1257 = vmul.f32 %v1239, 1.442695
  %v1258 = vpow.pop %v1257
  %v1259 = vmul.f32 %v1240, 1.442695
  %v1260 = vpow.pop %v1259
  %v1261 = vmul.f32 %v1241, 1.442695
  %v1262 = vpow.pop %v1261
  %v1263 = vmul.f32 %v1242, 1.442695
  %v1264 = vpow.pop %v1263
  %v1265 = vmul.f32 %v1243, 1.442695
  %v1266 = vpow.pop %v1265
  %v1267 = vmul.f32 %v1244, 1.442695
  %v1268 = vpow.pop %v1267
  %v1269 = vmul.f32 %v1245, 1.442695
  %v1270 = vpow.pop %v1269
  %v1271 = vmul.f32 %v1246, 1.442695
  %v1272 = vpow.pop %v1271
  %v1273 = vmul.f32 %v1247, 1.442695
  %v1274 = vpow.pop %v1273
  %v1275 = vmul.f32 %v1248, 1.442695
  %v1276 = vpow.pop %v1275
  %v1277 = vmul.f32 %v1249, 1.442695
  %v1278 = vpow.pop %v1277
  %v1279 = vmul.f32 %v1250, 1.442695
  %v1280 = vpow.pop %v1279
  %v1281 = vmul.f32 %v1251, 1.442695
  %v1282 = vpow.pop %v1281
  %v1283 = vmul.f32 %v1252, 1.442695
  %v1284 = vpow.pop %v1283
  %v1285 = vadd.f32 %v1254, 1.0
  %v1286 = vadd.f32 %v1256, 1.0
  %v1287 = vadd.f32 %v1258, 1.0
  %v1288 = vadd.f32 %v1260, 1.0
  %v1289 = vadd.f32 %v1262, 1.0
  %v1290 = vadd.f32 %v1264, 1.0
  %v1291 = vadd.f32 %v1266, 1.0
  %v1292 = vadd.f32 %v1268, 1.0
  %v1293 = vadd.f32 %v1270, 1.0
  %v1294 = vadd.f32 %v1272, 1.0
  %v1295 = vadd.f32 %v1274, 1.0
  %v1296 = vadd.f32 %v1276, 1.0
  %v1297 = vadd.f32 %v1278, 1.0
  %v1298 = vadd.f32 %v1280, 1.0
  %v1299 = vadd.f32 %v1282, 1.0
  %v1300 = vadd.f32 %v1284, 1.0
  %v1301 = vrcp.pop %v1285
  %v1302 = vmul.f32 1.0, %v1301
  %v1303 = vrcp.pop %v1286
  %v1304 = vmul.f32 1.0, %v1303
  %v1305 = vrcp.pop %v1287
  %v1306 = vmul.f32 1.0, %v1305
  %v1307 = vrcp.pop %v1288
  %v1308 = vmul.f32 1.0, %v1307
  %v1309 = vrcp.pop %v1289
  %v1310 = vmul.f32 1.0, %v1309
  %v1311 = vrcp.pop %v1290
  %v1312 = vmul.f32 1.0, %v1311
  %v1313 = vrcp.pop %v1291
  %v1314 = vmul.f32 1.0, %v1313
  %v1315 = vrcp.pop %v1292
  %v1316 = vmul.f32 1.0, %v1315
  %v1317 = vrcp.pop %v1293
  %v1318 = vmul.f32 1.0, %v1317
  %v1319 = vrcp.pop %v1294
  %v1320 = vmul.f32 1.0, %v1319
  %v1321 = vrcp.pop %v1295
  %v1322 = vmul.f32 1.0, %v1321
  %v1323 = vrcp.pop %v1296
  %v1324 = vmul.f32 1.0, %v1323
  %v1325 = vrcp.pop %v1297
  %v1326 = vmul.f32 1.0, %v1325
  %v1327 = vrcp.pop %v1298
  %v1328 = vmul.f32 1.0, %v1327
  %v1329 = vrcp.pop %v1299
  %v1330 = vmul.f32 1.0, %v1329
  %v1331 = vrcp.pop %v1300
  %v1332 = vmul.f32 1.0, %v1331
  %v1333 = vmul.f32 %v1302, 2.0
  %v1334 = vmul.f32 %v1304, 2.0
  %v1335 = vmul.f32 %v1306, 2.0
  %v1336 = vmul.f32 %v1308, 2.0
  %v1337 = vmul.f32 %v1310, 2.0
  %v1338 = vmul.f32 %v1312, 2.0
  %v1339 = vmul.f32 %v1314, 2.0
  %v1340 = vmul.f32 %v1316, 2.0
  %v1341 = vmul.f32 %v1318, 2.0
  %v1342 = vmul.f32 %v1320, 2.0
  %v1343 = vmul.f32 %v1322, 2.0
  %v1344 = vmul.f32 %v1324, 2.0
  %v1345 = vmul.f32 %v1326, 2.0
  %v1346 = vmul.f32 %v1328, 2.0
  %v1347 = vmul.f32 %v1330, 2.0
  %v1348 = vmul.f32 %v1332, 2.0
  %vm1349 = vcmp.ge.f32.partialorder %v1333, 1.0
  %vm1350 = vcmp.ge.f32.partialorder %v1334, 1.0
  %vm1351 = vcmp.ge.f32.partialorder %v1335, 1.0
  %vm1352 = vcmp.ge.f32.partialorder %v1336, 1.0
  %vm1353 = vcmp.ge.f32.partialorder %v1337, 1.0
  %vm1354 = vcmp.ge.f32.partialorder %v1338, 1.0
  %vm1355 = vcmp.ge.f32.partialorder %v1339, 1.0
  %vm1356 = vcmp.ge.f32.partialorder %v1340, 1.0
  %vm1357 = vcmp.ge.f32.partialorder %v1341, 1.0
  %vm1358 = vcmp.ge.f32.partialorder %v1342, 1.0
  %vm1359 = vcmp.ge.f32.partialorder %v1343, 1.0
  %vm1360 = vcmp.ge.f32.partialorder %v1344, 1.0
  %vm1361 = vcmp.ge.f32.partialorder %v1345, 1.0
  %vm1362 = vcmp.ge.f32.partialorder %v1346, 1.0
  %vm1363 = vcmp.ge.f32.partialorder %v1347, 1.0
  %vm1364 = vcmp.ge.f32.partialorder %v1348, 1.0
  %v1365 = vsel %vm1349, %v1333, 0.1
  %v1366 = vsel %vm1350, %v1334, 0.1
  %v1367 = vsel %vm1351, %v1335, 0.1
  %v1368 = vsel %vm1352, %v1336, 0.1
  %v1369 = vsel %vm1353, %v1337, 0.1
  %v1370 = vsel %vm1354, %v1338, 0.1
  %v1371 = vsel %vm1355, %v1339, 0.1
  %v1372 = vsel %vm1356, %v1340, 0.1
  %v1373 = vsel %vm1357, %v1341, 0.1
  %v1374 = vsel %vm1358, %v1342, 0.1
  %v1375 = vsel %vm1359, %v1343, 0.1
  %v1376 = vsel %vm1360, %v1344, 0.1
  %v1377 = vsel %vm1361, %v1345, 0.1
  %v1378 = vsel %vm1362, %v1346, 0.1
  %v1379 = vsel %vm1363, %v1347, 0.1
  %v1380 = vsel %vm1364, %v1348, 0.1
  %v1381 = vmul.f32 %v1070, %v1365
  %v1382 = vmul.f32 %v1071, %v1366
  %v1383 = vmul.f32 %v1072, %v1367
  %v1384 = vmul.f32 %v1073, %v1368
  %v1385 = vmul.f32 %v1074, %v1369
  %v1386 = vmul.f32 %v1075, %v1370
  %v1387 = vmul.f32 %v1076, %v1371
  %v1388 = vmul.f32 %v1077, %v1372
  %v1389 = vmul.f32 %v1078, %v1373
  %v1390 = vmul.f32 %v1079, %v1374
  %v1391 = vmul.f32 %v1080, %v1375
  %v1392 = vmul.f32 %v1081, %v1376
  %v1393 = vmul.f32 %v1082, %v1377
  %v1394 = vmul.f32 %v1083, %v1378
  %v1395 = vmul.f32 %v1084, %v1379
  %v1396 = vmul.f32 %v1085, %v1380
  %1397 = vst [vmem:[%s10] sm:$0xff] %v1381
  %1398 = vst [vmem:[%s10 + $0x8] sm:$0xff] %v1382
  %1399 = vst [vmem:[%s10 + $0x10] sm:$0xff] %v1383
  %1400 = vst [vmem:[%s10 + $0x18] sm:$0xff] %v1384
  %1401 = vst [vmem:[%s10 + $0x20] sm:$0xff] %v1385
  %1402 = vst [vmem:[%s10 + $0x28] sm:$0xff] %v1386
  %1403 = vst [vmem:[%s10 + $0x30] sm:$0xff] %v1387
  %1404 = vst [vmem:[%s10 + $0x38] sm:$0xff] %v1388
  %1405 = vst [vmem:[%s10 + $0x40] sm:$0xff] %v1389
  %1406 = vst [vmem:[%s10 + $0x48] sm:$0xff] %v1390
  %1407 = vst [vmem:[%s10 + $0x50] sm:$0xff] %v1391
  %1408 = vst [vmem:[%s10 + $0x58] sm:$0xff] %v1392
  %1409 = vst [vmem:[%s10 + $0x60] sm:$0xff] %v1393
  %1410 = vst [vmem:[%s10 + $0x68] sm:$0xff] %v1394
  %1411 = vst [vmem:[%s10 + $0x70] sm:$0xff] %v1395
  %1412 = vst [vmem:[%s10 + $0x78] sm:$0xff] %v1396
  %v1413 = vadd.f32 %v1381, %v39
  %v1414 = vadd.f32 %v1382, %v40
  %v1415 = vadd.f32 %v1383, %v41
  %v1416 = vadd.f32 %v1384, %v42
  %v1417 = vadd.f32 %v1385, %v43
  %v1418 = vadd.f32 %v1386, %v44
  %v1419 = vadd.f32 %v1387, %v45
  %v1420 = vadd.f32 %v1388, %v46
  %v1421 = vadd.f32 %v1389, %v47
  %v1422 = vadd.f32 %v1390, %v48
  %v1423 = vadd.f32 %v1391, %v49
  %v1424 = vadd.f32 %v1392, %v50
  %v1425 = vadd.f32 %v1393, %v51
  %v1426 = vadd.f32 %v1394, %v52
  %v1427 = vadd.f32 %v1395, %v53
  %v1428 = vadd.f32 %v1396, %v54
  %1429 = vst [vmem:[%s11] sm:$0xff] %v1413
  %1430 = vst [vmem:[%s11 + $0x8] sm:$0xff] %v1414
  %1431 = vst [vmem:[%s11 + $0x10] sm:$0xff] %v1415
  %1432 = vst [vmem:[%s11 + $0x18] sm:$0xff] %v1416
  %1433 = vst [vmem:[%s11 + $0x20] sm:$0xff] %v1417
  %1434 = vst [vmem:[%s11 + $0x28] sm:$0xff] %v1418
  %1435 = vst [vmem:[%s11 + $0x30] sm:$0xff] %v1419
  %1436 = vst [vmem:[%s11 + $0x38] sm:$0xff] %v1420
  %1437 = vst [vmem:[%s11 + $0x40] sm:$0xff] %v1421
  %1438 = vst [vmem:[%s11 + $0x48] sm:$0xff] %v1422
  %1439 = vst [vmem:[%s11 + $0x50] sm:$0xff] %v1423
  %1440 = vst [vmem:[%s11 + $0x58] sm:$0xff] %v1424
  %1441 = vst [vmem:[%s11 + $0x60] sm:$0xff] %v1425
  %1442 = vst [vmem:[%s11 + $0x68] sm:$0xff] %v1426
  %1443 = vst [vmem:[%s11 + $0x70] sm:$0xff] %v1427
  %1444 = vst [vmem:[%s11 + $0x78] sm:$0xff] %v1428
  %1445 = vadd.xlane.f32.xlu0 %v1413
  %v1446 = vpop.xlane.xlu0 %1445
  %1447 = vadd.xlane.f32.xlu0 %v1414
  %v1448 = vpop.xlane.xlu0 %1447
  %1449 = vadd.xlane.f32.xlu0 %v1415
  %v1450 = vpop.xlane.xlu0 %1449
  %1451 = vadd.xlane.f32.xlu0 %v1416
  %v1452 = vpop.xlane.xlu0 %1451
  %1453 = vadd.xlane.f32.xlu0 %v1417
  %v1454 = vpop.xlane.xlu0 %1453
  %1455 = vadd.xlane.f32.xlu0 %v1418
  %v1456 = vpop.xlane.xlu0 %1455
  %1457 = vadd.xlane.f32.xlu0 %v1419
  %v1458 = vpop.xlane.xlu0 %1457
  %1459 = vadd.xlane.f32.xlu0 %v1420
  %v1460 = vpop.xlane.xlu0 %1459
  %1461 = vadd.xlane.f32.xlu0 %v1421
  %v1462 = vpop.xlane.xlu0 %1461
  %1463 = vadd.xlane.f32.xlu0 %v1422
  %v1464 = vpop.xlane.xlu0 %1463
  %1465 = vadd.xlane.f32.xlu0 %v1423
  %v1466 = vpop.xlane.xlu0 %1465
  %1467 = vadd.xlane.f32.xlu0 %v1424
  %v1468 = vpop.xlane.xlu0 %1467
  %1469 = vadd.xlane.f32.xlu0 %v1425
  %v1470 = vpop.xlane.xlu0 %1469
  %1471 = vadd.xlane.f32.xlu0 %v1426
  %v1472 = vpop.xlane.xlu0 %1471
  %1473 = vadd.xlane.f32.xlu0 %v1427
  %v1474 = vpop.xlane.xlu0 %1473
  %1475 = vadd.xlane.f32.xlu0 %v1428
  %v1476 = vpop.xlane.xlu0 %1475
  %vm1477 = vcmp.gt.f32.partialorder %v1446, 0.0
  %vm1478 = vcmp.gt.f32.partialorder %v1448, 0.0
  %vm1479 = vcmp.gt.f32.partialorder %v1450, 0.0
  %vm1480 = vcmp.gt.f32.partialorder %v1452, 0.0
  %vm1481 = vcmp.gt.f32.partialorder %v1454, 0.0
  %vm1482 = vcmp.gt.f32.partialorder %v1456, 0.0
  %vm1483 = vcmp.gt.f32.partialorder %v1458, 0.0
  %vm1484 = vcmp.gt.f32.partialorder %v1460, 0.0
  %vm1485 = vcmp.gt.f32.partialorder %v1462, 0.0
  %vm1486 = vcmp.gt.f32.partialorder %v1464, 0.0
  %vm1487 = vcmp.gt.f32.partialorder %v1466, 0.0
  %vm1488 = vcmp.gt.f32.partialorder %v1468, 0.0
  %vm1489 = vcmp.gt.f32.partialorder %v1470, 0.0
  %vm1490 = vcmp.gt.f32.partialorder %v1472, 0.0
  %vm1491 = vcmp.gt.f32.partialorder %v1474, 0.0
  %vm1492 = vcmp.gt.f32.partialorder %v1476, 0.0
  %v1493 = vmax.f32 %v1446, 1e-12
  %v1494 = vmax.f32 %v1448, 1e-12
  %v1495 = vmax.f32 %v1450, 1e-12
  %v1496 = vmax.f32 %v1452, 1e-12
  %v1497 = vmax.f32 %v1454, 1e-12
  %v1498 = vmax.f32 %v1456, 1e-12
  %v1499 = vmax.f32 %v1458, 1e-12
  %v1500 = vmax.f32 %v1460, 1e-12
  %v1501 = vmax.f32 %v1462, 1e-12
  %v1502 = vmax.f32 %v1464, 1e-12
  %v1503 = vmax.f32 %v1466, 1e-12
  %v1504 = vmax.f32 %v1468, 1e-12
  %v1505 = vmax.f32 %v1470, 1e-12
  %v1506 = vmax.f32 %v1472, 1e-12
  %v1507 = vmax.f32 %v1474, 1e-12
  %v1508 = vmax.f32 %v1476, 1e-12
  %v1509 = vrsqrt.pop %v1493
  %v1510 = vrsqrt.pop %v1494
  %v1511 = vrsqrt.pop %v1495
  %v1512 = vrsqrt.pop %v1496
  %v1513 = vrsqrt.pop %v1497
  %v1514 = vrsqrt.pop %v1498
  %v1515 = vrsqrt.pop %v1499
  %v1516 = vrsqrt.pop %v1500
  %v1517 = vrsqrt.pop %v1501
  %v1518 = vrsqrt.pop %v1502
  %v1519 = vrsqrt.pop %v1503
  %v1520 = vrsqrt.pop %v1504
  %v1521 = vrsqrt.pop %v1505
  %v1522 = vrsqrt.pop %v1506
  %v1523 = vrsqrt.pop %v1507
  %v1524 = vrsqrt.pop %v1508
  %v1525 = vsel %vm1477, %v1509, 0.0
  %v1526 = vsel %vm1478, %v1510, 0.0
  %v1527 = vsel %vm1479, %v1511, 0.0
  %v1528 = vsel %vm1480, %v1512, 0.0
  %v1529 = vsel %vm1481, %v1513, 0.0
  %v1530 = vsel %vm1482, %v1514, 0.0
  %v1531 = vsel %vm1483, %v1515, 0.0
  %v1532 = vsel %vm1484, %v1516, 0.0
  %v1533 = vsel %vm1485, %v1517, 0.0
  %v1534 = vsel %vm1486, %v1518, 0.0
  %v1535 = vsel %vm1487, %v1519, 0.0
  %v1536 = vsel %vm1488, %v1520, 0.0
  %v1537 = vsel %vm1489, %v1521, 0.0
  %v1538 = vsel %vm1490, %v1522, 0.0
  %v1539 = vsel %vm1491, %v1523, 0.0
  %v1540 = vsel %vm1492, %v1524, 0.0
  %v1541 = vmul.f32 %v1413, %v1525
  %v1542 = vmul.f32 %v1414, %v1526
  %v1543 = vmul.f32 %v1415, %v1527
  %v1544 = vmul.f32 %v1416, %v1528
  %v1545 = vmul.f32 %v1417, %v1529
  %v1546 = vmul.f32 %v1418, %v1530
  %v1547 = vmul.f32 %v1419, %v1531
  %v1548 = vmul.f32 %v1420, %v1532
  %v1549 = vmul.f32 %v1421, %v1533
  %v1550 = vmul.f32 %v1422, %v1534
  %v1551 = vmul.f32 %v1423, %v1535
  %v1552 = vmul.f32 %v1424, %v1536
  %v1553 = vmul.f32 %v1425, %v1537
  %v1554 = vmul.f32 %v1426, %v1538
  %v1555 = vmul.f32 %v1427, %v1539
  %v1556 = vmul.f32 %v1428, %v1540
  %v1573 = vlaneseq
  %v1574 = vshrl.u32 %v1573, 7
  %v1575 = vsub.s32 %v746, %v1574
  %v1576 = vrot.slane %v1525, %v1575
  %v1577 = vadd.s32 %v746, 4294967288
  %v1578 = vlaneseq
  %v1579 = vshrl.u32 %v1578, 7
  %v1580 = vsub.s32 %v1577, %v1579
  %v1581 = vrot.slane %v1526, %v1580
  %vm1582 = vcmask 130112
  %v1583 = vsel %vm1582, %v1581, %v1576
  %v1584 = vadd.s32 %v746, 4294967280
  %v1585 = vlaneseq
  %v1586 = vshrl.u32 %v1585, 7
  %v1587 = vsub.s32 %v1584, %v1586
  %v1588 = vrot.slane %v1527, %v1587
  %vm1589 = vcmask 195712
  %v1590 = vsel %vm1589, %v1588, %v1583
  %v1591 = vadd.s32 %v746, 4294967272
  %v1592 = vlaneseq
  %v1593 = vshrl.u32 %v1592, 7
  %v1594 = vsub.s32 %v1591, %v1593
  %v1595 = vrot.slane %v1528, %v1594
  %vm1596 = vcmask 261312
  %v1597 = vsel %vm1596, %v1595, %v1590
  %v1598 = vadd.s32 %v746, 4294967264
  %v1599 = vlaneseq
  %v1600 = vshrl.u32 %v1599, 7
  %v1601 = vsub.s32 %v1598, %v1600
  %v1602 = vrot.slane %v1529, %v1601
  %vm1603 = vcmask 326912
  %v1604 = vsel %vm1603, %v1602, %v1597
  %v1605 = vadd.s32 %v746, 4294967256
  %v1606 = vlaneseq
  %v1607 = vshrl.u32 %v1606, 7
  %v1608 = vsub.s32 %v1605, %v1607
  %v1609 = vrot.slane %v1530, %v1608
  %vm1610 = vcmask 392512
  %v1611 = vsel %vm1610, %v1609, %v1604
  %v1612 = vadd.s32 %v746, 4294967248
  %v1613 = vlaneseq
  %v1614 = vshrl.u32 %v1613, 7
  %v1615 = vsub.s32 %v1612, %v1614
  %v1616 = vrot.slane %v1531, %v1615
  %vm1617 = vcmask 458112
  %v1618 = vsel %vm1617, %v1616, %v1611
  %v1619 = vadd.s32 %v746, 4294967240
  %v1620 = vlaneseq
  %v1621 = vshrl.u32 %v1620, 7
  %v1622 = vsub.s32 %v1619, %v1621
  %v1623 = vrot.slane %v1532, %v1622
  %vm1624 = vcmask 523712
  %v1625 = vsel %vm1624, %v1623, %v1618
  %v1626 = vadd.s32 %v746, 4294967232
  %v1627 = vlaneseq
  %v1628 = vshrl.u32 %v1627, 7
  %v1629 = vsub.s32 %v1626, %v1628
  %v1630 = vrot.slane %v1533, %v1629
  %vm1631 = vcmask 589312
  %v1632 = vsel %vm1631, %v1630, %v1625
  %v1633 = vadd.s32 %v746, 4294967224
  %v1634 = vlaneseq
  %v1635 = vshrl.u32 %v1634, 7
  %v1636 = vsub.s32 %v1633, %v1635
  %v1637 = vrot.slane %v1534, %v1636
  %vm1638 = vcmask 654912
  %v1639 = vsel %vm1638, %v1637, %v1632
  %v1640 = vadd.s32 %v746, 4294967216
  %v1641 = vlaneseq
  %v1642 = vshrl.u32 %v1641, 7
  %v1643 = vsub.s32 %v1640, %v1642
  %v1644 = vrot.slane %v1535, %v1643
  %vm1645 = vcmask 720512
  %v1646 = vsel %vm1645, %v1644, %v1639
  %v1647 = vadd.s32 %v746, 4294967208
  %v1648 = vlaneseq
  %v1649 = vshrl.u32 %v1648, 7
  %v1650 = vsub.s32 %v1647, %v1649
  %v1651 = vrot.slane %v1536, %v1650
  %vm1652 = vcmask 786112
  %v1653 = vsel %vm1652, %v1651, %v1646
  %v1654 = vadd.s32 %v746, 4294967200
  %v1655 = vlaneseq
  %v1656 = vshrl.u32 %v1655, 7
  %v1657 = vsub.s32 %v1654, %v1656
  %v1658 = vrot.slane %v1537, %v1657
  %vm1659 = vcmask 851712
  %v1660 = vsel %vm1659, %v1658, %v1653
  %v1661 = vadd.s32 %v746, 4294967192
  %v1662 = vlaneseq
  %v1663 = vshrl.u32 %v1662, 7
  %v1664 = vsub.s32 %v1661, %v1663
  %v1665 = vrot.slane %v1538, %v1664
  %vm1666 = vcmask 917312
  %v1667 = vsel %vm1666, %v1665, %v1660
  %v1668 = vadd.s32 %v746, 4294967184
  %v1669 = vlaneseq
  %v1670 = vshrl.u32 %v1669, 7
  %v1671 = vsub.s32 %v1668, %v1670
  %v1672 = vrot.slane %v1539, %v1671
  %vm1673 = vcmask 982912
  %v1674 = vsel %vm1673, %v1672, %v1667
  %v1675 = vadd.s32 %v746, 4294967176
  %v1676 = vlaneseq
  %v1677 = vshrl.u32 %v1676, 7
  %v1678 = vsub.s32 %v1675, %v1677
  %v1679 = vrot.slane %v1540, %v1678
  %vm1680 = vcmask 1048512
  %v1681 = vsel %vm1680, %v1679, %v1674
  %vm1682 = vcmask 1042434
  %v1683 = vsel %vm1682, %v1681, %v1681
  %vm1684 = vcmask 1043459
  %v1685 = vsel %vm1684, %v1681, %v1683
  %vm1686 = vcmask 1044484
  %v1687 = vsel %vm1686, %v1681, %v1685
  %vm1688 = vcmask 1045509
  %v1689 = vsel %vm1688, %v1681, %v1687
  %vm1690 = vcmask 1046534
  %v1691 = vsel %vm1690, %v1681, %v1689
  %vm1692 = vcmask 1047559
  %v1693 = vsel %vm1692, %v1681, %v1691
  %v1695 = vmul.f32 %v1541, %v1693
  %v1696 = vmul.f32 %v1542, %v1693
  %v1697 = vmul.f32 %v1543, %v1693
  %v1698 = vmul.f32 %v1544, %v1693
  %v1699 = vmul.f32 %v1545, %v1693
  %v1700 = vmul.f32 %v1546, %v1693
  %v1701 = vmul.f32 %v1547, %v1693
  %v1702 = vmul.f32 %v1548, %v1693
  %v1703 = vmul.f32 %v1549, %v1693
  %v1704 = vmul.f32 %v1550, %v1693
  %v1705 = vmul.f32 %v1551, %v1693
  %v1706 = vmul.f32 %v1552, %v1693
  %v1707 = vmul.f32 %v1553, %v1693
  %v1708 = vmul.f32 %v1554, %v1693
  %v1709 = vmul.f32 %v1555, %v1693
  %v1710 = vmul.f32 %v1556, %v1693
  %v1711 = vpack.c.bf16 %v1696, %v1695
  %v1712 = vpack.c.bf16 %v1698, %v1697
  %v1713 = vpack.c.bf16 %v1700, %v1699
  %v1714 = vpack.c.bf16 %v1702, %v1701
  %v1715 = vpack.c.bf16 %v1704, %v1703
  %v1716 = vpack.c.bf16 %v1706, %v1705
  %v1717 = vpack.c.bf16 %v1708, %v1707
  %v1718 = vpack.c.bf16 %v1710, %v1709
  %v1719 = vld [vmem:[%s1] sm:$0xff]
  %v1720 = vld [vmem:[%s1 + $0x8] sm:$0xff]
  %v1721 = vld [vmem:[%s1 + $0x10] sm:$0xff]
  %v1722 = vld [vmem:[%s1 + $0x18] sm:$0xff]
  %v1723 = vld [vmem:[%s1 + $0x20] sm:$0xff]
  %v1724 = vld [vmem:[%s1 + $0x28] sm:$0xff]
  %v1725 = vld [vmem:[%s1 + $0x30] sm:$0xff]
  %v1726 = vld [vmem:[%s1 + $0x38] sm:$0xff]
  %v1727 = vld [vmem:[%s1 + $0x40] sm:$0xff]
  %v1728 = vld [vmem:[%s1 + $0x48] sm:$0xff]
  %v1729 = vld [vmem:[%s1 + $0x50] sm:$0xff]
  %v1730 = vld [vmem:[%s1 + $0x58] sm:$0xff]
  %v1731 = vld [vmem:[%s1 + $0x60] sm:$0xff]
  %v1732 = vld [vmem:[%s1 + $0x68] sm:$0xff]
  %v1733 = vld [vmem:[%s1 + $0x70] sm:$0xff]
  %v1734 = vld [vmem:[%s1 + $0x78] sm:$0xff]
  %v1735 = vpack.c.bf16 %v1720, %v1719
  %v1736 = vpack.c.bf16 %v1722, %v1721
  %v1737 = vpack.c.bf16 %v1724, %v1723
  %v1738 = vpack.c.bf16 %v1726, %v1725
  %v1739 = vpack.c.bf16 %v1728, %v1727
  %v1740 = vpack.c.bf16 %v1730, %v1729
  %v1741 = vpack.c.bf16 %v1732, %v1731
  %v1742 = vpack.c.bf16 %v1734, %v1733
  %v1743 = vld [vmem:[%s6] sm:$0xff]
  %v1744 = vld [vmem:[%s6 + $0x8] sm:$0xff]
  %v1745 = vld [vmem:[%s6 + $0x10] sm:$0xff]
  %v1746 = vld [vmem:[%s6 + $0x18] sm:$0xff]
  %v1747 = vld [vmem:[%s6 + $0x20] sm:$0xff]
  %v1748 = vld [vmem:[%s6 + $0x28] sm:$0xff]
  %v1749 = vld [vmem:[%s6 + $0x30] sm:$0xff]
  %v1750 = vld [vmem:[%s6 + $0x38] sm:$0xff]
  %v1751 = vld [vmem:[%s6 + $0x40] sm:$0xff]
  %v1752 = vld [vmem:[%s6 + $0x48] sm:$0xff]
  %v1753 = vld [vmem:[%s6 + $0x50] sm:$0xff]
  %v1754 = vld [vmem:[%s6 + $0x58] sm:$0xff]
  %v1755 = vld [vmem:[%s6 + $0x60] sm:$0xff]
  %v1756 = vld [vmem:[%s6 + $0x68] sm:$0xff]
  %v1757 = vld [vmem:[%s6 + $0x70] sm:$0xff]
  %v1758 = vld [vmem:[%s6 + $0x78] sm:$0xff]
  %v1759 = vpack.c.bf16 %v1744, %v1743
  %v1760 = vpack.c.bf16 %v1746, %v1745
  %v1761 = vpack.c.bf16 %v1748, %v1747
  %v1762 = vpack.c.bf16 %v1750, %v1749
  %v1763 = vpack.c.bf16 %v1752, %v1751
  %v1764 = vpack.c.bf16 %v1754, %v1753
  %v1765 = vpack.c.bf16 %v1756, %v1755
  %v1766 = vpack.c.bf16 %v1758, %v1757
  %1767 = vmatprep.subr.bf16.mxu0 0
  %1768 = vmatpush1.bf16.msra.mxu0 %v1759
  %1769 = vmatprep.subr.bf16.mxu0 0
  %1770 = vmatpush1.bf16.msra.mxu0 %v1760
  %1771 = vmatprep.subr.bf16.mxu0 0
  %1772 = vmatpush1.bf16.msra.mxu0 %v1761
  %1773 = vmatprep.subr.bf16.mxu0 0
  %1774 = vmatpush1.bf16.msra.mxu0 %v1762
  %1775 = vmatprep.subr.bf16.mxu0 0
  %1776 = vmatpush1.bf16.msra.mxu0 %v1763
  %1777 = vmatprep.subr.bf16.mxu0 0
  %1778 = vmatpush1.bf16.msra.mxu0 %v1764
  %1779 = vmatprep.subr.bf16.mxu0 0
  %1780 = vmatpush1.bf16.msra.mxu0 %v1765
  %1781 = vmatprep.subr.bf16.mxu0 0
  %1782 = vmatpush1.bf16.msra.mxu0 %v1766
  %1783 = vmatprep.subr.bf16.mxu0 0
  %1784 = vmatpush1.bf16.msra.mxu0 0
  %1785 = vmatprep.subr.bf16.mxu0 0
  %1786 = vmatpush1.bf16.msra.mxu0 0
  %1787 = vmatprep.subr.bf16.mxu0 0
  %1788 = vmatpush1.bf16.msra.mxu0 0
  %1789 = vmatprep.subr.bf16.mxu0 0
  %1790 = vmatpush1.bf16.msra.mxu0 0
  %1791 = vmatprep.subr.bf16.mxu0 0
  %1792 = vmatpush1.bf16.msra.mxu0 0
  %1793 = vmatprep.subr.bf16.mxu0 0
  %1794 = vmatpush1.bf16.msra.mxu0 0
  %1795 = vmatprep.subr.bf16.mxu0 0
  %1796 = vmatpush1.bf16.msra.mxu0 0
  %1797 = vmatprep.subr.bf16.mxu0 0
  %1798 = vmatpush1.bf16.msra.mxu0 0
  %1799 = vmatprep.mubr.bf16.mxu0 0
  %1800 = vmatmul.mubr.bf16.gmra.mrb[0].mxu0 %v1735
  %v1801 = vpop.f32.mrb[0].mxu0
  %v1802 = vadd.f32 0.0, %v1801
  %v1803 = vpop.f32.mrb[0].mxu0
  %v1804 = vpop.f32.mrb[0].mxu0
  %v1805 = vadd.f32 0.0, %v1804
  %v1806 = vpop.f32.mrb[0].mxu0
  %1807 = vmatprep.mubr.bf16.mxu0 0
  %1808 = vmatmul.mubr.bf16.gmra.mrb[0].mxu0 %v1736
  %v1809 = vpop.f32.mrb[0].mxu0
  %v1810 = vadd.f32 0.0, %v1809
  %v1811 = vpop.f32.mrb[0].mxu0
  %v1812 = vpop.f32.mrb[0].mxu0
  %v1813 = vadd.f32 0.0, %v1812
  %v1814 = vpop.f32.mrb[0].mxu0
  %1815 = vmatprep.mubr.bf16.mxu0 0
  %1816 = vmatmul.mubr.bf16.gmra.mrb[0].mxu0 %v1737
  %v1817 = vpop.f32.mrb[0].mxu0
  %v1818 = vadd.f32 0.0, %v1817
  %v1819 = vpop.f32.mrb[0].mxu0
  %v1820 = vpop.f32.mrb[0].mxu0
  %v1821 = vadd.f32 0.0, %v1820
  %v1822 = vpop.f32.mrb[0].mxu0
  %1823 = vmatprep.mubr.bf16.mxu0 0
  %1824 = vmatmul.mubr.bf16.gmra.mrb[0].mxu0 %v1738
  %v1825 = vpop.f32.mrb[0].mxu0
  %v1826 = vadd.f32 0.0, %v1825
  %v1827 = vpop.f32.mrb[0].mxu0
  %v1828 = vpop.f32.mrb[0].mxu0
  %v1829 = vadd.f32 0.0, %v1828
  %v1830 = vpop.f32.mrb[0].mxu0
  %1831 = vmatprep.mubr.bf16.mxu0 0
  %1832 = vmatmul.mubr.bf16.gmra.mrb[0].mxu0 %v1739
  %v1833 = vpop.f32.mrb[0].mxu0
  %v1834 = vadd.f32 0.0, %v1833
  %v1835 = vpop.f32.mrb[0].mxu0
  %v1836 = vpop.f32.mrb[0].mxu0
  %v1837 = vadd.f32 0.0, %v1836
  %v1838 = vpop.f32.mrb[0].mxu0
  %1839 = vmatprep.mubr.bf16.mxu0 0
  %1840 = vmatmul.mubr.bf16.gmra.mrb[0].mxu0 %v1740
  %v1841 = vpop.f32.mrb[0].mxu0
  %v1842 = vadd.f32 0.0, %v1841
  %v1843 = vpop.f32.mrb[0].mxu0
  %v1844 = vpop.f32.mrb[0].mxu0
  %v1845 = vadd.f32 0.0, %v1844
  %v1846 = vpop.f32.mrb[0].mxu0
  %1847 = vmatprep.mubr.bf16.mxu0 0
  %1848 = vmatmul.mubr.bf16.gmra.mrb[0].mxu0 %v1741
  %v1849 = vpop.f32.mrb[0].mxu0
  %v1850 = vadd.f32 0.0, %v1849
  %v1851 = vpop.f32.mrb[0].mxu0
  %v1852 = vpop.f32.mrb[0].mxu0
  %v1853 = vadd.f32 0.0, %v1852
  %v1854 = vpop.f32.mrb[0].mxu0
  %1855 = vmatprep.mubr.bf16.mxu0 0
  %1856 = vmatmul.mubr.bf16.gmra.mrb[0].mxu0 %v1742
  %v1857 = vpop.f32.mrb[0].mxu0
  %v1858 = vadd.f32 0.0, %v1857
  %v1859 = vpop.f32.mrb[0].mxu0
  %v1860 = vpop.f32.mrb[0].mxu0
  %v1861 = vadd.f32 0.0, %v1860
  %v1862 = vpop.f32.mrb[0].mxu0
  %1863 = vdwg.mxu0
  %v1864 = vpack.c.bf16 %v1805, %v1802
  %v1865 = vpack.c.bf16 %v1813, %v1810
  %v1866 = vpack.c.bf16 %v1821, %v1818
  %v1867 = vpack.c.bf16 %v1829, %v1826
  %v1868 = vpack.c.bf16 %v1837, %v1834
  %v1869 = vpack.c.bf16 %v1845, %v1842
  %v1870 = vpack.c.bf16 %v1853, %v1850
  %v1871 = vpack.c.bf16 %v1861, %v1858
  %v1872 = vld [vmem:[%s7] sm:$0x1]
  %v1874 = vlaneseq
  %v1875 = vshrl.u32 %v1874, 7
  %v1876 = vsub.s32 0, %v1875
  %v1877 = vrot.slane %v1872, %v1876
  %1879 = vmatprep.subr.bf16.mxu0 0
  %1880 = vmatpush1.bf16.msra.mxu0 %v1864
  %1881 = vmatprep.subr.bf16.mxu0 0
  %1882 = vmatpush1.bf16.msra.mxu0 %v1865
  %1883 = vmatprep.subr.bf16.mxu0 0
  %1884 = vmatpush1.bf16.msra.mxu0 %v1866
  %1885 = vmatprep.subr.bf16.mxu0 0
  %1886 = vmatpush1.bf16.msra.mxu0 %v1867
  %1887 = vmatprep.subr.bf16.mxu0 0
  %1888 = vmatpush1.bf16.msra.mxu0 %v1868
  %1889 = vmatprep.subr.bf16.mxu0 0
  %1890 = vmatpush1.bf16.msra.mxu0 %v1869
  %1891 = vmatprep.subr.bf16.mxu0 0
  %1892 = vmatpush1.bf16.msra.mxu0 %v1870
  %1893 = vmatprep.subr.bf16.mxu0 0
  %1894 = vmatpush1.bf16.msra.mxu0 %v1871
  %1895 = vmatprep.subr.bf16.mxu0 0
  %1896 = vmatpush1.bf16.msra.mxu0 0
  %1897 = vmatprep.subr.bf16.mxu0 0
  %1898 = vmatpush1.bf16.msra.mxu0 0
  %1899 = vmatprep.subr.bf16.mxu0 0
  %1900 = vmatpush1.bf16.msra.mxu0 0
  %1901 = vmatprep.subr.bf16.mxu0 0
  %1902 = vmatpush1.bf16.msra.mxu0 0
  %1903 = vmatprep.subr.bf16.mxu0 0
  %1904 = vmatpush1.bf16.msra.mxu0 0
  %1905 = vmatprep.subr.bf16.mxu0 0
  %1906 = vmatpush1.bf16.msra.mxu0 0
  %1907 = vmatprep.subr.bf16.mxu0 0
  %1908 = vmatpush1.bf16.msra.mxu0 0
  %1909 = vmatprep.subr.bf16.mxu0 0
  %1910 = vmatpush1.bf16.msra.mxu0 0
  %1911 = vmatprep.mubr.bf16.mxu0 0
  %1912 = vmatmul.mubr.bf16.gmra.mrb[0].mxu0 %v1711
  %v1913 = vpop.f32.mrb[0].mxu0
  %v1914 = vadd.f32 %v1877, %v1913
  %v1915 = vpop.f32.mrb[0].mxu0
  %v1916 = vpop.f32.mrb[0].mxu0
  %v1917 = vadd.f32 %v1877, %v1916
  %v1918 = vpop.f32.mrb[0].mxu0
  %1919 = vmatprep.mubr.bf16.mxu0 0
  %1920 = vmatmul.mubr.bf16.gmra.mrb[0].mxu0 %v1712
  %v1921 = vpop.f32.mrb[0].mxu0
  %v1922 = vadd.f32 %v1877, %v1921
  %v1923 = vpop.f32.mrb[0].mxu0
  %v1924 = vpop.f32.mrb[0].mxu0
  %v1925 = vadd.f32 %v1877, %v1924
  %v1926 = vpop.f32.mrb[0].mxu0
  %1927 = vmatprep.mubr.bf16.mxu0 0
  %1928 = vmatmul.mubr.bf16.gmra.mrb[0].mxu0 %v1713
  %v1929 = vpop.f32.mrb[0].mxu0
  %v1930 = vadd.f32 %v1877, %v1929
  %v1931 = vpop.f32.mrb[0].mxu0
  %v1932 = vpop.f32.mrb[0].mxu0
  %v1933 = vadd.f32 %v1877, %v1932
  %v1934 = vpop.f32.mrb[0].mxu0
  %1935 = vmatprep.mubr.bf16.mxu0 0
  %1936 = vmatmul.mubr.bf16.gmra.mrb[0].mxu0 %v1714
  %v1937 = vpop.f32.mrb[0].mxu0
  %v1938 = vadd.f32 %v1877, %v1937
  %v1939 = vpop.f32.mrb[0].mxu0
  %v1940 = vpop.f32.mrb[0].mxu0
  %v1941 = vadd.f32 %v1877, %v1940
  %v1942 = vpop.f32.mrb[0].mxu0
  %1943 = vmatprep.mubr.bf16.mxu0 0
  %1944 = vmatmul.mubr.bf16.gmra.mrb[0].mxu0 %v1715
  %v1945 = vpop.f32.mrb[0].mxu0
  %v1946 = vadd.f32 %v1877, %v1945
  %v1947 = vpop.f32.mrb[0].mxu0
  %v1948 = vpop.f32.mrb[0].mxu0
  %v1949 = vadd.f32 %v1877, %v1948
  %v1950 = vpop.f32.mrb[0].mxu0
  %1951 = vmatprep.mubr.bf16.mxu0 0
  %1952 = vmatmul.mubr.bf16.gmra.mrb[0].mxu0 %v1716
  %v1953 = vpop.f32.mrb[0].mxu0
  %v1954 = vadd.f32 %v1877, %v1953
  %v1955 = vpop.f32.mrb[0].mxu0
  %v1956 = vpop.f32.mrb[0].mxu0
  %v1957 = vadd.f32 %v1877, %v1956
  %v1958 = vpop.f32.mrb[0].mxu0
  %1959 = vmatprep.mubr.bf16.mxu0 0
  %1960 = vmatmul.mubr.bf16.gmra.mrb[0].mxu0 %v1717
  %v1961 = vpop.f32.mrb[0].mxu0
  %v1962 = vadd.f32 %v1877, %v1961
  %v1963 = vpop.f32.mrb[0].mxu0
  %v1964 = vpop.f32.mrb[0].mxu0
  %v1965 = vadd.f32 %v1877, %v1964
  %v1966 = vpop.f32.mrb[0].mxu0
  %1967 = vmatprep.mubr.bf16.mxu0 0
  %1968 = vmatmul.mubr.bf16.gmra.mrb[0].mxu0 %v1718
  %v1969 = vpop.f32.mrb[0].mxu0
  %v1970 = vadd.f32 %v1877, %v1969
  %v1971 = vpop.f32.mrb[0].mxu0
  %v1972 = vpop.f32.mrb[0].mxu0
  %v1973 = vadd.f32 %v1877, %v1972
  %v1974 = vpop.f32.mrb[0].mxu0
  %1975 = vdwg.mxu0
  %v1976 = vmax.f32 %v1914, 0.0
  %v1977 = vmax.f32 %v1917, 0.0
  %v1978 = vmax.f32 %v1922, 0.0
  %v1979 = vmax.f32 %v1925, 0.0
  %v1980 = vmax.f32 %v1930, 0.0
  %v1981 = vmax.f32 %v1933, 0.0
  %v1982 = vmax.f32 %v1938, 0.0
  %v1983 = vmax.f32 %v1941, 0.0
  %v1984 = vmax.f32 %v1946, 0.0
  %v1985 = vmax.f32 %v1949, 0.0
  %v1986 = vmax.f32 %v1954, 0.0
  %v1987 = vmax.f32 %v1957, 0.0
  %v1988 = vmax.f32 %v1962, 0.0
  %v1989 = vmax.f32 %v1965, 0.0
  %v1990 = vmax.f32 %v1970, 0.0
  %v1991 = vmax.f32 %v1973, 0.0
  %v1992 = vpack.c.bf16 %v1977, %v1976
  %v1993 = vpack.c.bf16 %v1979, %v1978
  %v1994 = vpack.c.bf16 %v1981, %v1980
  %v1995 = vpack.c.bf16 %v1983, %v1982
  %v1996 = vpack.c.bf16 %v1985, %v1984
  %v1997 = vpack.c.bf16 %v1987, %v1986
  %v1998 = vpack.c.bf16 %v1989, %v1988
  %v1999 = vpack.c.bf16 %v1991, %v1990
  %v2000 = vld [vmem:[%s8] sm:$0xff]
  %v2001 = vld [vmem:[%s8 + $0x8] sm:$0xff]
  %v2002 = vld [vmem:[%s8 + $0x10] sm:$0xff]
  %v2003 = vld [vmem:[%s8 + $0x18] sm:$0xff]
  %v2004 = vld [vmem:[%s8 + $0x20] sm:$0xff]
  %v2005 = vld [vmem:[%s8 + $0x28] sm:$0xff]
  %v2006 = vld [vmem:[%s8 + $0x30] sm:$0xff]
  %v2007 = vld [vmem:[%s8 + $0x38] sm:$0xff]
  %v2008 = vld [vmem:[%s8 + $0x40] sm:$0xff]
  %v2009 = vld [vmem:[%s8 + $0x48] sm:$0xff]
  %v2010 = vld [vmem:[%s8 + $0x50] sm:$0xff]
  %v2011 = vld [vmem:[%s8 + $0x58] sm:$0xff]
  %v2012 = vld [vmem:[%s8 + $0x60] sm:$0xff]
  %v2013 = vld [vmem:[%s8 + $0x68] sm:$0xff]
  %v2014 = vld [vmem:[%s8 + $0x70] sm:$0xff]
  %v2015 = vld [vmem:[%s8 + $0x78] sm:$0xff]
  %v2016 = vpack.c.bf16 %v2001, %v2000
  %v2017 = vpack.c.bf16 %v2003, %v2002
  %v2018 = vpack.c.bf16 %v2005, %v2004
  %v2019 = vpack.c.bf16 %v2007, %v2006
  %v2020 = vpack.c.bf16 %v2009, %v2008
  %v2021 = vpack.c.bf16 %v2011, %v2010
  %v2022 = vpack.c.bf16 %v2013, %v2012
  %v2023 = vpack.c.bf16 %v2015, %v2014
  %2024 = vmatprep.subr.bf16.mxu0 0
  %2025 = vmatpush1.bf16.msra.mxu0 %v2016
  %2026 = vmatprep.subr.bf16.mxu0 0
  %2027 = vmatpush1.bf16.msra.mxu0 %v2017
  %2028 = vmatprep.subr.bf16.mxu0 0
  %2029 = vmatpush1.bf16.msra.mxu0 %v2018
  %2030 = vmatprep.subr.bf16.mxu0 0
  %2031 = vmatpush1.bf16.msra.mxu0 %v2019
  %2032 = vmatprep.subr.bf16.mxu0 0
  %2033 = vmatpush1.bf16.msra.mxu0 %v2020
  %2034 = vmatprep.subr.bf16.mxu0 0
  %2035 = vmatpush1.bf16.msra.mxu0 %v2021
  %2036 = vmatprep.subr.bf16.mxu0 0
  %2037 = vmatpush1.bf16.msra.mxu0 %v2022
  %2038 = vmatprep.subr.bf16.mxu0 0
  %2039 = vmatpush1.bf16.msra.mxu0 %v2023
  %2040 = vmatprep.subr.bf16.mxu0 0
  %2041 = vmatpush1.bf16.msra.mxu0 0
  %2042 = vmatprep.subr.bf16.mxu0 0
  %2043 = vmatpush1.bf16.msra.mxu0 0
  %2044 = vmatprep.subr.bf16.mxu0 0
  %2045 = vmatpush1.bf16.msra.mxu0 0
  %2046 = vmatprep.subr.bf16.mxu0 0
  %2047 = vmatpush1.bf16.msra.mxu0 0
  %2048 = vmatprep.subr.bf16.mxu0 0
  %2049 = vmatpush1.bf16.msra.mxu0 0
  %2050 = vmatprep.subr.bf16.mxu0 0
  %2051 = vmatpush1.bf16.msra.mxu0 0
  %2052 = vmatprep.subr.bf16.mxu0 0
  %2053 = vmatpush1.bf16.msra.mxu0 0
  %2054 = vmatprep.subr.bf16.mxu0 0
  %2055 = vmatpush1.bf16.msra.mxu0 0
  %2056 = vmatprep.mubr.bf16.mxu0 0
  %2057 = vmatmul.mubr.bf16.gmra.mrb[0].mxu0 %v1992
  %v2058 = vpop.f32.mrb[0].mxu0
  %v2059 = vadd.f32 0.0, %v2058
  %v2060 = vpop.f32.mrb[0].mxu0
  %v2061 = vpop.f32.mrb[0].mxu0
  %v2062 = vadd.f32 0.0, %v2061
  %v2063 = vpop.f32.mrb[0].mxu0
  %2064 = vmatprep.mubr.bf16.mxu0 0
  %2065 = vmatmul.mubr.bf16.gmra.mrb[0].mxu0 %v1993
  %v2066 = vpop.f32.mrb[0].mxu0
  %v2067 = vadd.f32 0.0, %v2066
  %v2068 = vpop.f32.mrb[0].mxu0
  %v2069 = vpop.f32.mrb[0].mxu0
  %v2070 = vadd.f32 0.0, %v2069
  %v2071 = vpop.f32.mrb[0].mxu0
  %2072 = vmatprep.mubr.bf16.mxu0 0
  %2073 = vmatmul.mubr.bf16.gmra.mrb[0].mxu0 %v1994
  %v2074 = vpop.f32.mrb[0].mxu0
  %v2075 = vadd.f32 0.0, %v2074
  %v2076 = vpop.f32.mrb[0].mxu0
  %v2077 = vpop.f32.mrb[0].mxu0
  %v2078 = vadd.f32 0.0, %v2077
  %v2079 = vpop.f32.mrb[0].mxu0
  %2080 = vmatprep.mubr.bf16.mxu0 0
  %2081 = vmatmul.mubr.bf16.gmra.mrb[0].mxu0 %v1995
  %v2082 = vpop.f32.mrb[0].mxu0
  %v2083 = vadd.f32 0.0, %v2082
  %v2084 = vpop.f32.mrb[0].mxu0
  %v2085 = vpop.f32.mrb[0].mxu0
  %v2086 = vadd.f32 0.0, %v2085
  %v2087 = vpop.f32.mrb[0].mxu0
  %2088 = vmatprep.mubr.bf16.mxu0 0
  %2089 = vmatmul.mubr.bf16.gmra.mrb[0].mxu0 %v1996
  %v2090 = vpop.f32.mrb[0].mxu0
  %v2091 = vadd.f32 0.0, %v2090
  %v2092 = vpop.f32.mrb[0].mxu0
  %v2093 = vpop.f32.mrb[0].mxu0
  %v2094 = vadd.f32 0.0, %v2093
  %v2095 = vpop.f32.mrb[0].mxu0
  %2096 = vmatprep.mubr.bf16.mxu0 0
  %2097 = vmatmul.mubr.bf16.gmra.mrb[0].mxu0 %v1997
  %v2098 = vpop.f32.mrb[0].mxu0
  %v2099 = vadd.f32 0.0, %v2098
  %v2100 = vpop.f32.mrb[0].mxu0
  %v2101 = vpop.f32.mrb[0].mxu0
  %v2102 = vadd.f32 0.0, %v2101
  %v2103 = vpop.f32.mrb[0].mxu0
  %2104 = vmatprep.mubr.bf16.mxu0 0
  %2105 = vmatmul.mubr.bf16.gmra.mrb[0].mxu0 %v1998
  %v2106 = vpop.f32.mrb[0].mxu0
  %v2107 = vadd.f32 0.0, %v2106
  %v2108 = vpop.f32.mrb[0].mxu0
  %v2109 = vpop.f32.mrb[0].mxu0
  %v2110 = vadd.f32 0.0, %v2109
  %v2111 = vpop.f32.mrb[0].mxu0
  %2112 = vmatprep.mubr.bf16.mxu0 0
  %2113 = vmatmul.mubr.bf16.gmra.mrb[0].mxu0 %v1999
  %v2114 = vpop.f32.mrb[0].mxu0
  %v2115 = vadd.f32 0.0, %v2114
  %v2116 = vpop.f32.mrb[0].mxu0
  %v2117 = vpop.f32.mrb[0].mxu0
  %v2118 = vadd.f32 0.0, %v2117
  %v2119 = vpop.f32.mrb[0].mxu0
  %2120 = vdwg.mxu0
  %v2121 = vpack.c.bf16 %v2062, %v2059
  %v2122 = vpack.c.bf16 %v2070, %v2067
  %v2123 = vpack.c.bf16 %v2078, %v2075
  %v2124 = vpack.c.bf16 %v2086, %v2083
  %v2125 = vpack.c.bf16 %v2094, %v2091
  %v2126 = vpack.c.bf16 %v2102, %v2099
  %v2127 = vpack.c.bf16 %v2110, %v2107
  %v2128 = vpack.c.bf16 %v2118, %v2115
  %v2129 = vld [vmem:[%s9] sm:$0x1]
  %v2131 = vlaneseq
  %v2132 = vshrl.u32 %v2131, 7
  %v2133 = vsub.s32 0, %v2132
  %v2134 = vrot.slane %v2129, %v2133
  %2136 = vmatprep.subr.bf16.mxu0 0
  %2137 = vmatpush1.bf16.msra.mxu0 %v2121
  %2138 = vmatprep.subr.bf16.mxu0 0
  %2139 = vmatpush1.bf16.msra.mxu0 %v2122
  %2140 = vmatprep.subr.bf16.mxu0 0
  %2141 = vmatpush1.bf16.msra.mxu0 %v2123
  %2142 = vmatprep.subr.bf16.mxu0 0
  %2143 = vmatpush1.bf16.msra.mxu0 %v2124
  %2144 = vmatprep.subr.bf16.mxu0 0
  %2145 = vmatpush1.bf16.msra.mxu0 %v2125
  %2146 = vmatprep.subr.bf16.mxu0 0
  %2147 = vmatpush1.bf16.msra.mxu0 %v2126
  %2148 = vmatprep.subr.bf16.mxu0 0
  %2149 = vmatpush1.bf16.msra.mxu0 %v2127
  %2150 = vmatprep.subr.bf16.mxu0 0
  %2151 = vmatpush1.bf16.msra.mxu0 %v2128
  %2152 = vmatprep.subr.bf16.mxu0 0
  %2153 = vmatpush1.bf16.msra.mxu0 0
  %2154 = vmatprep.subr.bf16.mxu0 0
  %2155 = vmatpush1.bf16.msra.mxu0 0
  %2156 = vmatprep.subr.bf16.mxu0 0
  %2157 = vmatpush1.bf16.msra.mxu0 0
  %2158 = vmatprep.subr.bf16.mxu0 0
  %2159 = vmatpush1.bf16.msra.mxu0 0
  %2160 = vmatprep.subr.bf16.mxu0 0
  %2161 = vmatpush1.bf16.msra.mxu0 0
  %2162 = vmatprep.subr.bf16.mxu0 0
  %2163 = vmatpush1.bf16.msra.mxu0 0
  %2164 = vmatprep.subr.bf16.mxu0 0
  %2165 = vmatpush1.bf16.msra.mxu0 0
  %2166 = vmatprep.subr.bf16.mxu0 0
  %2167 = vmatpush1.bf16.msra.mxu0 0
  %2168 = vmatprep.mubr.bf16.mxu0 0
  %2169 = vmatmul.mubr.bf16.gmra.mrb[0].mxu0 %v1711
  %v2170 = vpop.f32.mrb[0].mxu0
  %v2171 = vadd.f32 %v2134, %v2170
  %v2172 = vpop.f32.mrb[0].mxu0
  %v2173 = vpop.f32.mrb[0].mxu0
  %v2174 = vadd.f32 %v2134, %v2173
  %v2175 = vpop.f32.mrb[0].mxu0
  %2176 = vmatprep.mubr.bf16.mxu0 0
  %2177 = vmatmul.mubr.bf16.gmra.mrb[0].mxu0 %v1712
  %v2178 = vpop.f32.mrb[0].mxu0
  %v2179 = vadd.f32 %v2134, %v2178
  %v2180 = vpop.f32.mrb[0].mxu0
  %v2181 = vpop.f32.mrb[0].mxu0
  %v2182 = vadd.f32 %v2134, %v2181
  %v2183 = vpop.f32.mrb[0].mxu0
  %2184 = vmatprep.mubr.bf16.mxu0 0
  %2185 = vmatmul.mubr.bf16.gmra.mrb[0].mxu0 %v1713
  %v2186 = vpop.f32.mrb[0].mxu0
  %v2187 = vadd.f32 %v2134, %v2186
  %v2188 = vpop.f32.mrb[0].mxu0
  %v2189 = vpop.f32.mrb[0].mxu0
  %v2190 = vadd.f32 %v2134, %v2189
  %v2191 = vpop.f32.mrb[0].mxu0
  %2192 = vmatprep.mubr.bf16.mxu0 0
  %2193 = vmatmul.mubr.bf16.gmra.mrb[0].mxu0 %v1714
  %v2194 = vpop.f32.mrb[0].mxu0
  %v2195 = vadd.f32 %v2134, %v2194
  %v2196 = vpop.f32.mrb[0].mxu0
  %v2197 = vpop.f32.mrb[0].mxu0
  %v2198 = vadd.f32 %v2134, %v2197
  %v2199 = vpop.f32.mrb[0].mxu0
  %2200 = vmatprep.mubr.bf16.mxu0 0
  %2201 = vmatmul.mubr.bf16.gmra.mrb[0].mxu0 %v1715
  %v2202 = vpop.f32.mrb[0].mxu0
  %v2203 = vadd.f32 %v2134, %v2202
  %v2204 = vpop.f32.mrb[0].mxu0
  %v2205 = vpop.f32.mrb[0].mxu0
  %v2206 = vadd.f32 %v2134, %v2205
  %v2207 = vpop.f32.mrb[0].mxu0
  %2208 = vmatprep.mubr.bf16.mxu0 0
  %2209 = vmatmul.mubr.bf16.gmra.mrb[0].mxu0 %v1716
  %v2210 = vpop.f32.mrb[0].mxu0
  %v2211 = vadd.f32 %v2134, %v2210
  %v2212 = vpop.f32.mrb[0].mxu0
  %v2213 = vpop.f32.mrb[0].mxu0
  %v2214 = vadd.f32 %v2134, %v2213
  %v2215 = vpop.f32.mrb[0].mxu0
  %2216 = vmatprep.mubr.bf16.mxu0 0
  %2217 = vmatmul.mubr.bf16.gmra.mrb[0].mxu0 %v1717
  %v2218 = vpop.f32.mrb[0].mxu0
  %v2219 = vadd.f32 %v2134, %v2218
  %v2220 = vpop.f32.mrb[0].mxu0
  %v2221 = vpop.f32.mrb[0].mxu0
  %v2222 = vadd.f32 %v2134, %v2221
  %v2223 = vpop.f32.mrb[0].mxu0
  %2224 = vmatprep.mubr.bf16.mxu0 0
  %2225 = vmatmul.mubr.bf16.gmra.mrb[0].mxu0 %v1718
  %v2226 = vpop.f32.mrb[0].mxu0
  %v2227 = vadd.f32 %v2134, %v2226
  %v2228 = vpop.f32.mrb[0].mxu0
  %v2229 = vpop.f32.mrb[0].mxu0
  %v2230 = vadd.f32 %v2134, %v2229
  %v2231 = vpop.f32.mrb[0].mxu0
  %2232 = vdwg.mxu0
  %2233 = vst [vmem:[%s12] sm:$0xff] %v2171
  %2234 = vst [vmem:[%s12 + $0x8] sm:$0xff] %v2174
  %2235 = vst [vmem:[%s12 + $0x10] sm:$0xff] %v2179
  %2236 = vst [vmem:[%s12 + $0x18] sm:$0xff] %v2182
  %2237 = vst [vmem:[%s12 + $0x20] sm:$0xff] %v2187
  %2238 = vst [vmem:[%s12 + $0x28] sm:$0xff] %v2190
  %2239 = vst [vmem:[%s12 + $0x30] sm:$0xff] %v2195
  %2240 = vst [vmem:[%s12 + $0x38] sm:$0xff] %v2198
  %2241 = vst [vmem:[%s12 + $0x40] sm:$0xff] %v2203
  %2242 = vst [vmem:[%s12 + $0x48] sm:$0xff] %v2206
  %2243 = vst [vmem:[%s12 + $0x50] sm:$0xff] %v2211
  %2244 = vst [vmem:[%s12 + $0x58] sm:$0xff] %v2214
  %2245 = vst [vmem:[%s12 + $0x60] sm:$0xff] %v2219
  %2246 = vst [vmem:[%s12 + $0x68] sm:$0xff] %v2222
  %2247 = vst [vmem:[%s12 + $0x70] sm:$0xff] %v2227
  %2248 = vst [vmem:[%s12 + $0x78] sm:$0xff] %v2230
  // Predicated region
  $region42: #{grcn_forward.1} parent=0 // pred_check
    _
  $region43: #{grcn_forward.1} parent=0 // pred_check_branch
    %2250 = sbr.rel (0) target = $region45
  $region44: #{grcn_forward.1} parent=0 // pred_region
    _
  $region45: #{grcn_forward.1} parent=0 // pred_fallthru
    _
  // Predicated region
  $region46: #{grcn_forward.1} parent=0 // pred_check
    _
  $region47: #{grcn_forward.1} parent=0 // pred_check_branch
    %2252 = sbr.rel (0) target = $region49
  $region48: #{grcn_forward.1} parent=0 // pred_region
    _
  $region49: #{grcn_forward.1} parent=0 // pred_fallthru
    _
  // Predicated region
  $region50: #{grcn_forward.1} parent=0 // pred_check
    _
  $region51: #{grcn_forward.1} parent=0 // pred_check_branch
    %2254 = sbr.rel (0) target = $region53
  $region52: #{grcn_forward.1} parent=0 // pred_region
    _
  $region53: #{grcn_forward.1} parent=0 // pred_fallthru
    _
  // Predicated region
  $region54: #{grcn_forward.1} parent=0 // pred_check
    _
  $region55: #{grcn_forward.1} parent=0 // pred_check_branch
    %2256 = sbr.rel (0) target = $region57
  $region56: #{grcn_forward.1} parent=0 // pred_region
    _
  $region57: #{grcn_forward.1} parent=0 // pred_fallthru
    _
  // Predicated region
  $region58: #{grcn_forward.1} parent=0 // pred_check
    _
  $region59: #{grcn_forward.1} parent=0 // pred_check_branch
    %2258 = sbr.rel (0) target = $region61
  $region60: #{grcn_forward.1} parent=0 // pred_region
    _
  $region61: #{grcn_forward.1} parent=0 // pred_fallthru
    _
  // Predicated region
  $region62: #{grcn_forward.1} parent=0 // pred_check
    _
  $region63: #{grcn_forward.1} parent=0 // pred_check_branch
    %2260 = sbr.rel (0) target = $region65
  $region64: #{grcn_forward.1} parent=0 // pred_region
    _
  $region65: #{grcn_forward.1} parent=0 // pred_fallthru
    _

</llo_original>
